<compile_context>
chip_gen: v6e
topology: v6e:2x2x1
jax: 0.10.0
libtpu: 0.0.40
codegen_flags: <defaults>
</compile_context>

<pallas_src>
import jax
import jax.numpy as jnp
from jax.experimental import pallas as pl
from jax.experimental.pallas import tpu as pltpu

LATENT = 256        # small stand-in for the default latent=1024 (multiple of 128)
NUM_LAYERS = 4      # mlp=4
BATCH = 16
N_CHUNK_MAX = 256   # max output-column chunk streamed per MXU push


def mapping_net_kernel(x_ref, w_ref, b_ref, o_ref, h0_ref, h1_ref):
    # x_ref:  (TILE_B, D)       bf16 activations
    # w_ref:  (L, D_in, D_out)  bf16 weights (pre-transposed from PyTorch [out, in])
    # b_ref:  (L, 1, D)         f32 biases
    # o_ref:  (TILE_B, D)       f32 output
    # h0/h1:  (TILE_B, D)       bf16 ping-pong inter-layer activation scratch
    num_layers, d_in, d_out = w_ref.shape
    n_chunk = N_CHUNK_MAX if d_out % N_CHUNK_MAX == 0 else 128
    n_chunk = min(n_chunk, d_out)
    num_chunks = d_out // n_chunk

    scratch = (h0_ref, h1_ref)
    src = x_ref                                   # layer 0 reads the input tile
    for l in range(num_layers):                   # statically unrolled (L=4)
        last = l == num_layers - 1
        dst = o_ref if last else scratch[l % 2]   # ping-pong; never src == dst
        for c in range(num_chunks):               # stream RHS in <=256-col chunks
            sl = pl.ds(c * n_chunk, n_chunk)
            # MXU dot (bf16 x bf16 -> f32), fused bias add + cast, chunk store.
            acc = jnp.dot(src[...], w_ref[l, :, sl],
                          preferred_element_type=jnp.float32)
            acc = acc + b_ref[l, :, sl]           # (1, n_chunk) broadcast add
            dst[:, sl] = acc.astype(dst.dtype)    # bf16 for hidden, f32 for o_ref
        src = dst


def prepare_params(weights, biases):
    """One-time parameter prep (do at load time, NOT per forward call).

    weights: (L, D, D) in PyTorch layout W[out, in]; biases: (L, D).
    Returns bf16 [L, D_in, D_out] weights and f32 (L, 1, D) biases.
    """
    L, D, _ = weights.shape
    w_in_out = jnp.swapaxes(weights, 1, 2).astype(jnp.bfloat16)
    b_resh = biases.astype(jnp.float32).reshape(L, 1, D)
    return w_in_out, b_resh


def _vmem_cap_bytes():
    try:
        return int(pltpu.get_tpu_info().vmem_capacity_bytes)
    except Exception:
        return 64 << 20   # conservative: v7x per-TC VMEM


def _vmem_need_bytes(L, D, tile_b, resident_bufs):
    w_bytes = L * D * D * 2                        # bf16 weights
    b_bytes = L * 8 * D * 4                        # f32 biases (1 -> 8 sublane pad)
    io_bytes = tile_b * D * 2 + tile_b * D * 4     # bf16 x tile + f32 out tile
    scratch_bytes = 2 * tile_b * D * 2             # two bf16 ping-pong h buffers
    return resident_bufs * (w_bytes + b_bytes) + 2 * io_bytes + scratch_bytes


def _build_pallas_call(B, D, L, tile_b, out_dtype, resident_buffer_count):
    grid = (B // tile_b,)

    resident_kwargs = {}
    if resident_buffer_count == 1:
        # Grid-invariant blocks: no point double-buffering them.
        resident_kwargs = dict(pipeline_mode=pl.Buffered(1))
    w_spec = pl.BlockSpec((L, D, D), lambda i: (0, 0, 0), **resident_kwargs)
    b_spec = pl.BlockSpec((L, 1, D), lambda i: (0, 0, 0), **resident_kwargs)

    need = _vmem_need_bytes(L, D, tile_b, resident_buffer_count)
    cap = _vmem_cap_bytes()
    vmem_limit = int(min(cap - (4 << 20), max(16 << 20, need + (2 << 20))))

    return pl.pallas_call(
        mapping_net_kernel,
        out_shape=jax.ShapeDtypeStruct((B, D), out_dtype),
        grid_spec=pltpu.PrefetchScalarGridSpec(
            num_scalar_prefetch=0,
            grid=grid,
            in_specs=[
                pl.BlockSpec((tile_b, D), lambda i: (i, 0)),   # x tile
                w_spec,                                        # weights, resident
                b_spec,                                        # biases, resident
            ],
            out_specs=pl.BlockSpec((tile_b, D), lambda i: (i, 0)),
            scratch_shapes=[
                pltpu.VMEM((tile_b, D), jnp.bfloat16),         # h ping
                pltpu.VMEM((tile_b, D), jnp.bfloat16),         # h pong
            ],
        ),
        compiler_params=pltpu.CompilerParams(
            dimension_semantics=("parallel",),   # batch axis -> megacore shardable
            vmem_limit_bytes=vmem_limit,
        ),
    )


def mapping_net_forward(x, w_in_out, b_resh):
    """x: (B, D) f32; w_in_out/b_resh: outputs of prepare_params()."""
    B, D = x.shape
    L = w_in_out.shape[0]
    assert w_in_out.shape == (L, D, D) and b_resh.shape == (L, 1, D)
    assert D % 128 == 0

    if B <= 128:
        tile_b = B                      # whole (small) batch in one grid step
    elif B % 256 == 0:
        tile_b = 256                    # v6e/v7x: amortize MXU weight loads 2x
    else:
        tile_b = 128
    assert B % tile_b == 0 and (tile_b % 8 == 0 or tile_b == B)

    x_bf16 = x.astype(jnp.bfloat16)

    try:
        call = _build_pallas_call(B, D, L, tile_b, x.dtype, resident_buffer_count=1)
        return call(x_bf16, w_in_out, b_resh)
    except Exception:
        # Fallback only for JAX versions that reject single-buffered
        # pipeline_mode; keeps the script runnable everywhere.
        call = _build_pallas_call(B, D, L, tile_b, x.dtype, resident_buffer_count=2)
        return call(x_bf16, w_in_out, b_resh)


def init_params(key, latent=LATENT, mlp=NUM_LAYERS):
    # Mirrors __init__: weight.data.normal_() (std-normal), bias.data.zero_()
    keys = jax.random.split(key, mlp)
    weights = jnp.stack(
        [jax.random.normal(k, (latent, latent), dtype=jnp.float32) for k in keys]
    )
    biases = jnp.zeros((mlp, latent), dtype=jnp.float32)
    return weights, biases


def reference_forward_f32(x, weights, biases):
    # Full-precision reference of the PyTorch module: h = h @ W.T + b per layer.
    h = x.astype(jnp.float32)
    for l in range(weights.shape[0]):
        h = jax.lax.dot_general(
            h, weights[l],
            dimension_numbers=(((1,), (1,)), ((), ())),
            precision=jax.lax.Precision.HIGHEST,
            preferred_element_type=jnp.float32) + biases[l][None, :]
    return h


def reference_forward_bf16(x, weights, biases):
    # Mirrors the kernel's precision policy: bf16 operands, f32 accumulation.
    h = x.astype(jnp.bfloat16)
    w = jnp.swapaxes(weights, 1, 2).astype(jnp.bfloat16)
    b = biases.astype(jnp.float32)
    acc = None
    for l in range(w.shape[0]):
        acc = jax.lax.dot_general(
            h, w[l],
            dimension_numbers=(((1,), (0,)), ((), ())),
            preferred_element_type=jnp.float32) + b[l][None, :]
        h = acc.astype(jnp.bfloat16)
    return acc


if __name__ == "__main__":
    key = jax.random.PRNGKey(0)
    k_x, k_w, k_b = jax.random.split(key, 3)

    x = jax.random.normal(k_x, (BATCH, LATENT), dtype=jnp.float32)
    weights, biases = init_params(k_w)
    # __init__ zeroes the biases, but forward must handle arbitrary learned
    # values -- use nonzero biases here so the bias-add path is exercised.
    biases = jax.random.normal(k_b, biases.shape, dtype=jnp.float32)

    # One-time parameter prep (transpose + bf16 cast) outside the forward path.
    w_prep, b_prep = jax.block_until_ready(prepare_params(weights, biases))

    out = jax.block_until_ready(mapping_net_forward(x, w_prep, b_prep))

    ref_f32 = reference_forward_f32(x, weights, biases)
    ref_b16 = reference_forward_bf16(x, weights, biases)

    assert out.shape == (BATCH, LATENT) and out.dtype == x.dtype
    # Output magnitude grows ~16x per layer (std-normal 256-dim weights), so use
    # scale-normalized error. Tight check vs the precision-matched reference,
    # looser check vs the full-f32 reference (documents the bf16-operand choice).
    scale = jnp.max(jnp.abs(ref_f32))
    err_b16 = float(jnp.max(jnp.abs(out - ref_b16)) / scale)
    err_f32 = float(jnp.max(jnp.abs(out - ref_f32)) / scale)
    assert err_b16 < 2e-3, f"mismatch vs bf16-matched reference: {err_b16}"
    assert err_f32 < 2e-2, f"mismatch vs f32 reference: {err_f32}"

    print("KERNEL_OK")
</pallas_src>

<mosaic_0001>
module attributes {stable_mosaic.version = 11 : i64} {
  func.func @mapping_net_kernel(%arg0: i32, %arg1: memref<16x256xbf16, #tpu.memory_space<vmem>>, %arg2: memref<4x256x256xbf16, #tpu.memory_space<vmem>>, %arg3: memref<4x1x256xf32, #tpu.memory_space<vmem>>, %arg4: memref<16x256xf32, #tpu.memory_space<vmem>>, %arg5: memref<16x256xbf16, #tpu.memory_space<vmem>>, %arg6: memref<16x256xbf16, #tpu.memory_space<vmem>>) attributes {dimension_semantics = [#tpu.dimension_semantics<parallel>], iteration_bounds = array<i64: 1>, scalar_prefetch = 0 : i64, scratch_operands = 2 : i64, tpu.core_type = #tpu.core_type<tc>, window_params = [{transform_indices = @transform_0, window_bounds = array<i64: 16, 256>}, {pipeline_mode = #tpu.pipeline_mode<synchronous>, transform_indices = @transform_1, window_bounds = array<i64: 4, 256, 256>}, {pipeline_mode = #tpu.pipeline_mode<synchronous>, transform_indices = @transform_2, window_bounds = array<i64: 4, 1, 256>}, {transform_indices = @transform_3, window_bounds = array<i64: 16, 256>}]} {
    %c0 = arith.constant 0 : index
    %c0_0 = arith.constant 0 : index
    %0 = vector.load %arg1[%c0, %c0_0] : memref<16x256xbf16, #tpu.memory_space<vmem>>, vector<16x256xbf16>
    %c0_1 = arith.constant 0 : index
    %c0_2 = arith.constant 0 : index
    %c0_3 = arith.constant 0 : index
    %1 = vector.load %arg2[%c0_1, %c0_2, %c0_3] : memref<4x256x256xbf16, #tpu.memory_space<vmem>>, vector<1x256x256xbf16>
    %2 = vector.shape_cast %1 : vector<1x256x256xbf16> to vector<256x256xbf16>
    %cst = arith.constant dense<0.000000e+00> : vector<16x256xf32>
    %3 = tpu.matmul %0, %2, %cst {dimension_numbers = #tpu.dot_dimension_numbers<[1], [0], [0], [1], [0, 0, 1, 1], [], []>} : vector<16x256xbf16>, vector<256x256xbf16>, vector<16x256xf32> -> vector<16x256xf32>
    %c0_4 = arith.constant 0 : index
    %c0_5 = arith.constant 0 : index
    %c0_6 = arith.constant 0 : index
    %4 = vector.load %arg3[%c0_4, %c0_5, %c0_6] : memref<4x1x256xf32, #tpu.memory_space<vmem>>, vector<1x1x256xf32>
    %5 = vector.shape_cast %4 : vector<1x1x256xf32> to vector<1x256xf32>
    %6 = vector.broadcast %5 : vector<1x256xf32> to vector<16x256xf32>
    %7 = arith.addf %3, %6 : vector<16x256xf32>
    %8 = arith.truncf %7 : vector<16x256xf32> to vector<16x256xbf16>
    %c0_7 = arith.constant 0 : index
    %c0_8 = arith.constant 0 : index
    %9 = vector.load %arg5[%c0_7, %c0_8] : memref<16x256xbf16, #tpu.memory_space<vmem>>, vector<16x256xbf16>
    tpu.vector_store %arg5[%c0_7, %c0_8], %8 {strides = array<i32>} : memref<16x256xbf16, #tpu.memory_space<vmem>>, vector<16x256xbf16>,
    %c0_9 = arith.constant 0 : index
    %c0_10 = arith.constant 0 : index
    %10 = vector.load %arg5[%c0_9, %c0_10] : memref<16x256xbf16, #tpu.memory_space<vmem>>, vector<16x256xbf16>
    %c1 = arith.constant 1 : index
    %c0_11 = arith.constant 0 : index
    %c0_12 = arith.constant 0 : index
    %11 = vector.load %arg2[%c1, %c0_11, %c0_12] : memref<4x256x256xbf16, #tpu.memory_space<vmem>>, vector<1x256x256xbf16>
    %12 = vector.shape_cast %11 : vector<1x256x256xbf16> to vector<256x256xbf16>
    %cst_13 = arith.constant dense<0.000000e+00> : vector<16x256xf32>
    %13 = tpu.matmul %10, %12, %cst_13 {dimension_numbers = #tpu.dot_dimension_numbers<[1], [0], [0], [1], [0, 0, 1, 1], [], []>} : vector<16x256xbf16>, vector<256x256xbf16>, vector<16x256xf32> -> vector<16x256xf32>
    %c1_14 = arith.constant 1 : index
    %c0_15 = arith.constant 0 : index
    %c0_16 = arith.constant 0 : index
    %14 = vector.load %arg3[%c1_14, %c0_15, %c0_16] : memref<4x1x256xf32, #tpu.memory_space<vmem>>, vector<1x1x256xf32>
    %15 = vector.shape_cast %14 : vector<1x1x256xf32> to vector<1x256xf32>
    %16 = vector.broadcast %15 : vector<1x256xf32> to vector<16x256xf32>
    %17 = arith.addf %13, %16 : vector<16x256xf32>
    %18 = arith.truncf %17 : vector<16x256xf32> to vector<16x256xbf16>
    %c0_17 = arith.constant 0 : index
    %c0_18 = arith.constant 0 : index
    %19 = vector.load %arg6[%c0_17, %c0_18] : memref<16x256xbf16, #tpu.memory_space<vmem>>, vector<16x256xbf16>
    tpu.vector_store %arg6[%c0_17, %c0_18], %18 {strides = array<i32>} : memref<16x256xbf16, #tpu.memory_space<vmem>>, vector<16x256xbf16>,
    %c0_19 = arith.constant 0 : index
    %c0_20 = arith.constant 0 : index
    %20 = vector.load %arg6[%c0_19, %c0_20] : memref<16x256xbf16, #tpu.memory_space<vmem>>, vector<16x256xbf16>
    %c2 = arith.constant 2 : index
    %c0_21 = arith.constant 0 : index
    %c0_22 = arith.constant 0 : index
    %21 = vector.load %arg2[%c2, %c0_21, %c0_22] : memref<4x256x256xbf16, #tpu.memory_space<vmem>>, vector<1x256x256xbf16>
    %22 = vector.shape_cast %21 : vector<1x256x256xbf16> to vector<256x256xbf16>
    %cst_23 = arith.constant dense<0.000000e+00> : vector<16x256xf32>
    %23 = tpu.matmul %20, %22, %cst_23 {dimension_numbers = #tpu.dot_dimension_numbers<[1], [0], [0], [1], [0, 0, 1, 1], [], []>} : vector<16x256xbf16>, vector<256x256xbf16>, vector<16x256xf32> -> vector<16x256xf32>
    %c2_24 = arith.constant 2 : index
    %c0_25 = arith.constant 0 : index
    %c0_26 = arith.constant 0 : index
    %24 = vector.load %arg3[%c2_24, %c0_25, %c0_26] : memref<4x1x256xf32, #tpu.memory_space<vmem>>, vector<1x1x256xf32>
    %25 = vector.shape_cast %24 : vector<1x1x256xf32> to vector<1x256xf32>
    %26 = vector.broadcast %25 : vector<1x256xf32> to vector<16x256xf32>
    %27 = arith.addf %23, %26 : vector<16x256xf32>
    %28 = arith.truncf %27 : vector<16x256xf32> to vector<16x256xbf16>
    %c0_27 = arith.constant 0 : index
    %c0_28 = arith.constant 0 : index
    %29 = vector.load %arg5[%c0_27, %c0_28] : memref<16x256xbf16, #tpu.memory_space<vmem>>, vector<16x256xbf16>
    tpu.vector_store %arg5[%c0_27, %c0_28], %28 {strides = array<i32>} : memref<16x256xbf16, #tpu.memory_space<vmem>>, vector<16x256xbf16>,
    %c0_29 = arith.constant 0 : index
    %c0_30 = arith.constant 0 : index
    %30 = vector.load %arg5[%c0_29, %c0_30] : memref<16x256xbf16, #tpu.memory_space<vmem>>, vector<16x256xbf16>
    %c3 = arith.constant 3 : index
    %c0_31 = arith.constant 0 : index
    %c0_32 = arith.constant 0 : index
    %31 = vector.load %arg2[%c3, %c0_31, %c0_32] : memref<4x256x256xbf16, #tpu.memory_space<vmem>>, vector<1x256x256xbf16>
    %32 = vector.shape_cast %31 : vector<1x256x256xbf16> to vector<256x256xbf16>
    %cst_33 = arith.constant dense<0.000000e+00> : vector<16x256xf32>
    %33 = tpu.matmul %30, %32, %cst_33 {dimension_numbers = #tpu.dot_dimension_numbers<[1], [0], [0], [1], [0, 0, 1, 1], [], []>} : vector<16x256xbf16>, vector<256x256xbf16>, vector<16x256xf32> -> vector<16x256xf32>
    %c3_34 = arith.constant 3 : index
    %c0_35 = arith.constant 0 : index
    %c0_36 = arith.constant 0 : index
    %34 = vector.load %arg3[%c3_34, %c0_35, %c0_36] : memref<4x1x256xf32, #tpu.memory_space<vmem>>, vector<1x1x256xf32>
    %35 = vector.shape_cast %34 : vector<1x1x256xf32> to vector<1x256xf32>
    %36 = vector.broadcast %35 : vector<1x256xf32> to vector<16x256xf32>
    %37 = arith.addf %33, %36 : vector<16x256xf32>
    %c0_37 = arith.constant 0 : index
    %c0_38 = arith.constant 0 : index
    %38 = vector.load %arg4[%c0_37, %c0_38] : memref<16x256xf32, #tpu.memory_space<vmem>>, vector<16x256xf32>
    tpu.vector_store %arg4[%c0_37, %c0_38], %37 {strides = array<i32>} : memref<16x256xf32, #tpu.memory_space<vmem>>, vector<16x256xf32>,
    return
  }
  func.func @transform_0(%arg0: i32) -> (i32, i32) {
    %c0_i32 = arith.constant 0 : i32
    %c0_i32_0 = arith.constant 0 : i32
    return %arg0, %c0_i32 : i32, i32
  }
  func.func @transform_1(%arg0: i32) -> (i32, i32, i32) {
    %c0_i32 = arith.constant 0 : i32
    %c0_i32_0 = arith.constant 0 : i32
    %c0_i32_1 = arith.constant 0 : i32
    %c0_i32_2 = arith.constant 0 : i32
    return %c0_i32, %c0_i32_0, %c0_i32_1 : i32, i32, i32
  }
  func.func @transform_2(%arg0: i32) -> (i32, i32, i32) {
    %c0_i32 = arith.constant 0 : i32
    %c0_i32_0 = arith.constant 0 : i32
    %c0_i32_1 = arith.constant 0 : i32
    %c0_i32_2 = arith.constant 0 : i32
    return %c0_i32, %c0_i32_0, %c0_i32_1 : i32, i32, i32
  }
  func.func @transform_3(%arg0: i32) -> (i32, i32) {
    %c0_i32 = arith.constant 0 : i32
    %c0_i32_0 = arith.constant 0 : i32
    return %arg0, %c0_i32 : i32, i32
  }
}

module attributes {stable_mosaic.version = 11 : i64} {
  func.func @mapping_net_kernel(%arg0: i32, %arg1: memref<16x256xbf16, #tpu.memory_space<vmem>>, %arg2: memref<4x256x256xbf16, #tpu.memory_space<vmem>>, %arg3: memref<4x1x256xf32, #tpu.memory_space<vmem>>, %arg4: memref<16x256xf32, #tpu.memory_space<vmem>>, %arg5: memref<16x256xbf16, #tpu.memory_space<vmem>>, %arg6: memref<16x256xbf16, #tpu.memory_space<vmem>>) attributes {dimension_semantics = [#tpu.dimension_semantics<parallel>], iteration_bounds = array<i64: 1>, scalar_prefetch = 0 : i64, scratch_operands = 2 : i64, tpu.core_type = #tpu.core_type<tc>, window_params = [{transform_indices = @transform_0, window_bounds = array<i64: 16, 256>}, {pipeline_mode = #tpu.pipeline_mode<synchronous>, transform_indices = @transform_1, window_bounds = array<i64: 4, 256, 256>}, {pipeline_mode = #tpu.pipeline_mode<synchronous>, transform_indices = @transform_2, window_bounds = array<i64: 4, 1, 256>}, {transform_indices = @transform_3, window_bounds = array<i64: 16, 256>}]} {
    %c0 = arith.constant 0 : index
    %c0_0 = arith.constant 0 : index
    %0 = vector.load %arg1[%c0, %c0_0] : memref<16x256xbf16, #tpu.memory_space<vmem>>, vector<16x256xbf16>
    %c0_1 = arith.constant 0 : index
    %c0_2 = arith.constant 0 : index
    %c0_3 = arith.constant 0 : index
    %1 = vector.load %arg2[%c0_1, %c0_2, %c0_3] : memref<4x256x256xbf16, #tpu.memory_space<vmem>>, vector<1x256x256xbf16>
    %2 = vector.shape_cast %1 : vector<1x256x256xbf16> to vector<256x256xbf16>
    %cst = arith.constant dense<0.000000e+00> : vector<16x256xf32>
    %3 = tpu.matmul %0, %2, %cst {dimension_numbers = #tpu.dot_dimension_numbers<[1], [0], [0], [1], [0, 0, 1, 1], [], []>} : vector<16x256xbf16>, vector<256x256xbf16>, vector<16x256xf32> -> vector<16x256xf32>
    %c0_4 = arith.constant 0 : index
    %c0_5 = arith.constant 0 : index
    %c0_6 = arith.constant 0 : index
    %4 = vector.load %arg3[%c0_4, %c0_5, %c0_6] : memref<4x1x256xf32, #tpu.memory_space<vmem>>, vector<1x1x256xf32>
    %5 = vector.shape_cast %4 : vector<1x1x256xf32> to vector<1x256xf32>
    %6 = vector.broadcast %5 : vector<1x256xf32> to vector<16x256xf32>
    %7 = arith.addf %3, %6 : vector<16x256xf32>
    %8 = arith.truncf %7 : vector<16x256xf32> to vector<16x256xbf16>
    %c0_7 = arith.constant 0 : index
    %c0_8 = arith.constant 0 : index
    %9 = vector.load %arg5[%c0_7, %c0_8] : memref<16x256xbf16, #tpu.memory_space<vmem>>, vector<16x256xbf16>
    tpu.vector_store %arg5[%c0_7, %c0_8], %8 {strides = array<i32>} : memref<16x256xbf16, #tpu.memory_space<vmem>>, vector<16x256xbf16>,
    %c0_9 = arith.constant 0 : index
    %c0_10 = arith.constant 0 : index
    %10 = vector.load %arg5[%c0_9, %c0_10] : memref<16x256xbf16, #tpu.memory_space<vmem>>, vector<16x256xbf16>
    %c1 = arith.constant 1 : index
    %c0_11 = arith.constant 0 : index
    %c0_12 = arith.constant 0 : index
    %11 = vector.load %arg2[%c1, %c0_11, %c0_12] : memref<4x256x256xbf16, #tpu.memory_space<vmem>>, vector<1x256x256xbf16>
    %12 = vector.shape_cast %11 : vector<1x256x256xbf16> to vector<256x256xbf16>
    %cst_13 = arith.constant dense<0.000000e+00> : vector<16x256xf32>
    %13 = tpu.matmul %10, %12, %cst_13 {dimension_numbers = #tpu.dot_dimension_numbers<[1], [0], [0], [1], [0, 0, 1, 1], [], []>} : vector<16x256xbf16>, vector<256x256xbf16>, vector<16x256xf32> -> vector<16x256xf32>
    %c1_14 = arith.constant 1 : index
    %c0_15 = arith.constant 0 : index
    %c0_16 = arith.constant 0 : index
    %14 = vector.load %arg3[%c1_14, %c0_15, %c0_16] : memref<4x1x256xf32, #tpu.memory_space<vmem>>, vector<1x1x256xf32>
    %15 = vector.shape_cast %14 : vector<1x1x256xf32> to vector<1x256xf32>
    %16 = vector.broadcast %15 : vector<1x256xf32> to vector<16x256xf32>
    %17 = arith.addf %13, %16 : vector<16x256xf32>
    %18 = arith.truncf %17 : vector<16x256xf32> to vector<16x256xbf16>
    %c0_17 = arith.constant 0 : index
    %c0_18 = arith.constant 0 : index
    %19 = vector.load %arg6[%c0_17, %c0_18] : memref<16x256xbf16, #tpu.memory_space<vmem>>, vector<16x256xbf16>
    tpu.vector_store %arg6[%c0_17, %c0_18], %18 {strides = array<i32>} : memref<16x256xbf16, #tpu.memory_space<vmem>>, vector<16x256xbf16>,
    %c0_19 = arith.constant 0 : index
    %c0_20 = arith.constant 0 : index
    %20 = vector.load %arg6[%c0_19, %c0_20] : memref<16x256xbf16, #tpu.memory_space<vmem>>, vector<16x256xbf16>
    %c2 = arith.constant 2 : index
    %c0_21 = arith.constant 0 : index
    %c0_22 = arith.constant 0 : index
    %21 = vector.load %arg2[%c2, %c0_21, %c0_22] : memref<4x256x256xbf16, #tpu.memory_space<vmem>>, vector<1x256x256xbf16>
    %22 = vector.shape_cast %21 : vector<1x256x256xbf16> to vector<256x256xbf16>
    %cst_23 = arith.constant dense<0.000000e+00> : vector<16x256xf32>
    %23 = tpu.matmul %20, %22, %cst_23 {dimension_numbers = #tpu.dot_dimension_numbers<[1], [0], [0], [1], [0, 0, 1, 1], [], []>} : vector<16x256xbf16>, vector<256x256xbf16>, vector<16x256xf32> -> vector<16x256xf32>
    %c2_24 = arith.constant 2 : index
    %c0_25 = arith.constant 0 : index
    %c0_26 = arith.constant 0 : index
    %24 = vector.load %arg3[%c2_24, %c0_25, %c0_26] : memref<4x1x256xf32, #tpu.memory_space<vmem>>, vector<1x1x256xf32>
    %25 = vector.shape_cast %24 : vector<1x1x256xf32> to vector<1x256xf32>
    %26 = vector.broadcast %25 : vector<1x256xf32> to vector<16x256xf32>
    %27 = arith.addf %23, %26 : vector<16x256xf32>
    %28 = arith.truncf %27 : vector<16x256xf32> to vector<16x256xbf16>
    %c0_27 = arith.constant 0 : index
    %c0_28 = arith.constant 0 : index
    %29 = vector.load %arg5[%c0_27, %c0_28] : memref<16x256xbf16, #tpu.memory_space<vmem>>, vector<16x256xbf16>
    tpu.vector_store %arg5[%c0_27, %c0_28], %28 {strides = array<i32>} : memref<16x256xbf16, #tpu.memory_space<vmem>>, vector<16x256xbf16>,
    %c0_29 = arith.constant 0 : index
    %c0_30 = arith.constant 0 : index
    %30 = vector.load %arg5[%c0_29, %c0_30] : memref<16x256xbf16, #tpu.memory_space<vmem>>, vector<16x256xbf16>
    %c3 = arith.constant 3 : index
    %c0_31 = arith.constant 0 : index
    %c0_32 = arith.constant 0 : index
    %31 = vector.load %arg2[%c3, %c0_31, %c0_32] : memref<4x256x256xbf16, #tpu.memory_space<vmem>>, vector<1x256x256xbf16>
    %32 = vector.shape_cast %31 : vector<1x256x256xbf16> to vector<256x256xbf16>
    %cst_33 = arith.constant dense<0.000000e+00> : vector<16x256xf32>
    %33 = tpu.matmul %30, %32, %cst_33 {dimension_numbers = #tpu.dot_dimension_numbers<[1], [0], [0], [1], [0, 0, 1, 1], [], []>} : vector<16x256xbf16>, vector<256x256xbf16>, vector<16x256xf32> -> vector<16x256xf32>
    %c3_34 = arith.constant 3 : index
    %c0_35 = arith.constant 0 : index
    %c0_36 = arith.constant 0 : index
    %34 = vector.load %arg3[%c3_34, %c0_35, %c0_36] : memref<4x1x256xf32, #tpu.memory_space<vmem>>, vector<1x1x256xf32>
    %35 = vector.shape_cast %34 : vector<1x1x256xf32> to vector<1x256xf32>
    %36 = vector.broadcast %35 : vector<1x256xf32> to vector<16x256xf32>
    %37 = arith.addf %33, %36 : vector<16x256xf32>
    %c0_37 = arith.constant 0 : index
    %c0_38 = arith.constant 0 : index
    %38 = vector.load %arg4[%c0_37, %c0_38] : memref<16x256xf32, #tpu.memory_space<vmem>>, vector<16x256xf32>
    tpu.vector_store %arg4[%c0_37, %c0_38], %37 {strides = array<i32>} : memref<16x256xf32, #tpu.memory_space<vmem>>, vector<16x256xf32>,
    return
  }
  func.func @transform_0(%arg0: i32) -> (i32, i32) {
    %c0_i32 = arith.constant 0 : i32
    %c0_i32_0 = arith.constant 0 : i32
    return %arg0, %c0_i32 : i32, i32
  }
  func.func @transform_1(%arg0: i32) -> (i32, i32, i32) {
    %c0_i32 = arith.constant 0 : i32
    %c0_i32_0 = arith.constant 0 : i32
    %c0_i32_1 = arith.constant 0 : i32
    %c0_i32_2 = arith.constant 0 : i32
    return %c0_i32, %c0_i32_0, %c0_i32_1 : i32, i32, i32
  }
  func.func @transform_2(%arg0: i32) -> (i32, i32, i32) {
    %c0_i32 = arith.constant 0 : i32
    %c0_i32_0 = arith.constant 0 : i32
    %c0_i32_1 = arith.constant 0 : i32
    %c0_i32_2 = arith.constant 0 : i32
    return %c0_i32, %c0_i32_0, %c0_i32_1 : i32, i32, i32
  }
  func.func @transform_3(%arg0: i32) -> (i32, i32) {
    %c0_i32 = arith.constant 0 : i32
    %c0_i32_0 = arith.constant 0 : i32
    return %arg0, %c0_i32 : i32, i32
  }
}

</mosaic_0001>

<llo_original>
// kernel: tpu_custom_call.1
$region0: #{tpu_custom_call.1}
  #allocation0 [shape = 'u32[]', space=smem, size = 0x4, offset = 0x4, fixed_abs, tag = 'smem constant byte address 0x4 - core index']
  #allocation1 [shape = 'u32[144,128]{1,0:T(1,128)}', space=vmem, size = 0x12000, scoped, tag = 'internal scratch']
  #allocation2 [shape = 'bf16[16,256]{1,0:T(8,128)(2,1)}', space=vmem, size = 0x2000, scoped, tag = 'scratch operand']
  #allocation3 [shape = 'bf16[16,256]{1,0:T(8,128)(2,1)}', space=vmem, size = 0x2000, scoped, tag = 'scratch operand']
  %s0 = inlined_call_operand.hbm [shape: bf16[16,256], index: 0, kind: input, shape index: {}]
  %s1 = inlined_call_operand.hbm [shape: bf16[4,256,256], index: 1, kind: input, shape index: {}]
  %s2 = inlined_call_operand.hbm [shape: f32[4,1,256], index: 2, kind: input, shape index: {}]
  %s3 = inlined_call_operand.hbm [shape: f32[16,256], index: 3, kind: output, shape index: {}]
  %s4 = sld [smem:[#allocation0]]
  $region34: #{tpu_custom_call.1} parent=0
    _
  %s6 = ssub.s32 1, %s4
  %s7 = scalar_select 0, %s6, %s4
  $region1: #{tpu_custom_call.1} parent=0
    #allocation4 [shape = 'u8[8192]{0}', space=vmem, size = 0x2000, scoped, tag = 'input window, operand 0, single buffered']
    #allocation5 [shape = 's32[1]{0}', space=sflag, size = 0x4, scoped, tag = 'scoped memory for tpu_custom_call.1']
    #allocation6 [shape = 's32[1]{0}', space=sflag, size = 0x4, scoped, tag = 'scoped memory for tpu_custom_call.1']
    #allocation7 [shape = 'u8[524288]{0}', space=vmem, size = 0x80000, scoped, tag = 'input window, operand 1, single buffered']
    #allocation8 [shape = 's32[1]{0}', space=sflag, size = 0x4, scoped, tag = 'scoped memory for tpu_custom_call.1']
    #allocation9 [shape = 'u8[4096]{0}', space=vmem, size = 0x1000, scoped, tag = 'input window, operand 2, single buffered']
    #allocation10 [shape = 'u8[16384]{0}', space=vmem, size = 0x4000, scoped, tag = 'output window, operand 0, single buffered']
    %8 = vsyncpa [#allocation5], 0
    %9 = vsyncpa [#allocation8], 0
    %10 = vsyncpa [#allocation6], 0
    // Predicated region
    $region2: #{tpu_custom_call.1} parent=1 // pred_check
      _
    $region3: #{tpu_custom_call.1} parent=1 // pred_check_branch
      %12 = sbr.rel (0) target = $region5
    $region4: #{tpu_custom_call.1} parent=1 // pred_region
      %s14 = ssub.s32 256, 256
      %15 = vsyncadd [#allocation5], %s14
      %s16 = sshll.u32 [#allocation4], 4
      %s17 = int_to_ptr.vmem [resolvable:$true] %s16
      %22 = dma.hbm_to_vmem [thread:$0]  %s0, 256, %s17, [#allocation5], 128, 128, 8
    $region5: #{tpu_custom_call.1} parent=1 // pred_fallthru
      _
    // Predicated region
    $region6: #{tpu_custom_call.1} parent=1 // pred_check
      _
    $region7: #{tpu_custom_call.1} parent=1 // pred_check_branch
      %24 = sbr.rel (0) target = $region9
    $region8: #{tpu_custom_call.1} parent=1 // pred_region
      %s26 = ssub.s32 16384, 16384
      %27 = vsyncadd [#allocation8], %s26
      %s28 = sshll.u32 [#allocation7], 4
      %s29 = int_to_ptr.vmem [resolvable:$true] %s28
      %34 = dma.hbm_to_vmem [thread:$0]  %s1, 16384, %s29, [#allocation8], 128, 128, 8
    $region9: #{tpu_custom_call.1} parent=1 // pred_fallthru
      _
    // Predicated region
    $region10: #{tpu_custom_call.1} parent=1 // pred_check
      _
    $region11: #{tpu_custom_call.1} parent=1 // pred_check_branch
      %36 = sbr.rel (0) target = $region13
    $region12: #{tpu_custom_call.1} parent=1 // pred_region
      %s38 = ssub.s32 128, 128
      %39 = vsyncadd [#allocation8], %s38
      %s40 = sshll.u32 [#allocation9], 4
      %s41 = int_to_ptr.vmem [resolvable:$true] %s40
      %46 = dma.hbm_to_vmem [thread:$0]  %s2, 128, %s41, [#allocation8], 32, 32, 2
    $region13: #{tpu_custom_call.1} parent=1 // pred_fallthru
      _
    // Predicated region
    $region14: #{tpu_custom_call.1} parent=1 // pred_check
      _
    $region15: #{tpu_custom_call.1} parent=1 // pred_check_branch
      %48 = sbr.rel (0) target = $region17
    $region16: #{tpu_custom_call.1} parent=1 // pred_region
      %49 = dma.done [#allocation5], 256
    $region17: #{tpu_custom_call.1} parent=1 // pred_fallthru
      _
    // Predicated region
    $region18: #{tpu_custom_call.1} parent=1 // pred_check
      _
    $region19: #{tpu_custom_call.1} parent=1 // pred_check_branch
      %51 = sbr.rel (0) target = $region21
    $region20: #{tpu_custom_call.1} parent=1 // pred_region
      %52 = dma.done [#allocation8], 16384
    $region21: #{tpu_custom_call.1} parent=1 // pred_fallthru
      _
    // Predicated region
    $region22: #{tpu_custom_call.1} parent=1 // pred_check
      _
    $region23: #{tpu_custom_call.1} parent=1 // pred_check_branch
      %54 = sbr.rel (0) target = $region25
    $region24: #{tpu_custom_call.1} parent=1 // pred_region
      %55 = dma.done [#allocation8], 128
    $region25: #{tpu_custom_call.1} parent=1 // pred_fallthru
      _
    %v56 = vld [vmem:[#allocation4] sm:$0xff]
    %v57 = vld [vmem:[#allocation4 + $0x8] sm:$0xff]
    %v58 = vld [vmem:[#allocation7] sm:$0xff]
    %v59 = vld [vmem:[#allocation7 + $0x8] sm:$0xff]
    %v60 = vld [vmem:[#allocation7 + $0x10] sm:$0xff]
    %v61 = vld [vmem:[#allocation7 + $0x18] sm:$0xff]
    %v62 = vld [vmem:[#allocation7 + $0x20] sm:$0xff]
    %v63 = vld [vmem:[#allocation7 + $0x28] sm:$0xff]
    %v64 = vld [vmem:[#allocation7 + $0x30] sm:$0xff]
    %v65 = vld [vmem:[#allocation7 + $0x38] sm:$0xff]
    %v66 = vld [vmem:[#allocation7 + $0x40] sm:$0xff]
    %v67 = vld [vmem:[#allocation7 + $0x48] sm:$0xff]
    %v68 = vld [vmem:[#allocation7 + $0x50] sm:$0xff]
    %v69 = vld [vmem:[#allocation7 + $0x58] sm:$0xff]
    %v70 = vld [vmem:[#allocation7 + $0x60] sm:$0xff]
    %v71 = vld [vmem:[#allocation7 + $0x68] sm:$0xff]
    %v72 = vld [vmem:[#allocation7 + $0x70] sm:$0xff]
    %v73 = vld [vmem:[#allocation7 + $0x78] sm:$0xff]
    %v74 = vld [vmem:[#allocation7 + $0x80] sm:$0xff]
    %v75 = vld [vmem:[#allocation7 + $0x88] sm:$0xff]
    %v76 = vld [vmem:[#allocation7 + $0x90] sm:$0xff]
    %v77 = vld [vmem:[#allocation7 + $0x98] sm:$0xff]
    %v78 = vld [vmem:[#allocation7 + $0xa0] sm:$0xff]
    %v79 = vld [vmem:[#allocation7 + $0xa8] sm:$0xff]
    %v80 = vld [vmem:[#allocation7 + $0xb0] sm:$0xff]
    %v81 = vld [vmem:[#allocation7 + $0xb8] sm:$0xff]
    %v82 = vld [vmem:[#allocation7 + $0xc0] sm:$0xff]
    %v83 = vld [vmem:[#allocation7 + $0xc8] sm:$0xff]
    %v84 = vld [vmem:[#allocation7 + $0xd0] sm:$0xff]
    %v85 = vld [vmem:[#allocation7 + $0xd8] sm:$0xff]
    %v86 = vld [vmem:[#allocation7 + $0xe0] sm:$0xff]
    %v87 = vld [vmem:[#allocation7 + $0xe8] sm:$0xff]
    %v88 = vld [vmem:[#allocation7 + $0xf0] sm:$0xff]
    %v89 = vld [vmem:[#allocation7 + $0xf8] sm:$0xff]
    %v90 = vld [vmem:[#allocation9] sm:$0x3]
    %v92 = vlaneseq
    %v93 = vshrl.u32 %v92, 7
    %v94 = vsub.s32 0, %v93
    %v95 = vrot.slane %v90, %v94
    %v96 = vlaneseq
    %v97 = vshrl.u32 %v96, 7
    %v98 = vsub.s32 1, %v97
    %v99 = vrot.slane %v90, %v98
    %v104 = vunpack.c.l.b16 %v56
    %v105 = vunpack.c.h.b16 %v56
    %v106 = vunpack.c.l.b16 %v57
    %v107 = vunpack.c.h.b16 %v57
    %v108 = vpack.c.b16 %v106, %v104
    %v109 = vpack.c.b16 %v107, %v105
    %v144 = vunpack.c.l.b16 %v58
    %v145 = vunpack.c.h.b16 %v58
    %v146 = vunpack.c.l.b16 %v59
    %v147 = vunpack.c.h.b16 %v59
    %v148 = vunpack.c.l.b16 %v60
    %v149 = vunpack.c.h.b16 %v60
    %v150 = vunpack.c.l.b16 %v61
    %v151 = vunpack.c.h.b16 %v61
    %v152 = vunpack.c.l.b16 %v62
    %v153 = vunpack.c.h.b16 %v62
    %v154 = vunpack.c.l.b16 %v63
    %v155 = vunpack.c.h.b16 %v63
    %v156 = vunpack.c.l.b16 %v64
    %v157 = vunpack.c.h.b16 %v64
    %v158 = vunpack.c.l.b16 %v65
    %v159 = vunpack.c.h.b16 %v65
    %v160 = vunpack.c.l.b16 %v66
    %v161 = vunpack.c.h.b16 %v66
    %v162 = vunpack.c.l.b16 %v67
    %v163 = vunpack.c.h.b16 %v67
    %v164 = vunpack.c.l.b16 %v68
    %v165 = vunpack.c.h.b16 %v68
    %v166 = vunpack.c.l.b16 %v69
    %v167 = vunpack.c.h.b16 %v69
    %v168 = vunpack.c.l.b16 %v70
    %v169 = vunpack.c.h.b16 %v70
    %v170 = vunpack.c.l.b16 %v71
    %v171 = vunpack.c.h.b16 %v71
    %v172 = vunpack.c.l.b16 %v72
    %v173 = vunpack.c.h.b16 %v72
    %v174 = vunpack.c.l.b16 %v73
    %v175 = vunpack.c.h.b16 %v73
    %v176 = vunpack.c.l.b16 %v74
    %v177 = vunpack.c.h.b16 %v74
    %v178 = vunpack.c.l.b16 %v75
    %v179 = vunpack.c.h.b16 %v75
    %v180 = vunpack.c.l.b16 %v76
    %v181 = vunpack.c.h.b16 %v76
    %v182 = vunpack.c.l.b16 %v77
    %v183 = vunpack.c.h.b16 %v77
    %v184 = vunpack.c.l.b16 %v78
    %v185 = vunpack.c.h.b16 %v78
    %v186 = vunpack.c.l.b16 %v79
    %v187 = vunpack.c.h.b16 %v79
    %v188 = vunpack.c.l.b16 %v80
    %v189 = vunpack.c.h.b16 %v80
    %v190 = vunpack.c.l.b16 %v81
    %v191 = vunpack.c.h.b16 %v81
    %v192 = vunpack.c.l.b16 %v82
    %v193 = vunpack.c.h.b16 %v82
    %v194 = vunpack.c.l.b16 %v83
    %v195 = vunpack.c.h.b16 %v83
    %v196 = vunpack.c.l.b16 %v84
    %v197 = vunpack.c.h.b16 %v84
    %v198 = vunpack.c.l.b16 %v85
    %v199 = vunpack.c.h.b16 %v85
    %v200 = vunpack.c.l.b16 %v86
    %v201 = vunpack.c.h.b16 %v86
    %v202 = vunpack.c.l.b16 %v87
    %v203 = vunpack.c.h.b16 %v87
    %v204 = vunpack.c.l.b16 %v88
    %v205 = vunpack.c.h.b16 %v88
    %v206 = vunpack.c.l.b16 %v89
    %v207 = vunpack.c.h.b16 %v89
    %v208 = vpack.c.b16 %v146, %v144
    %v209 = vpack.c.b16 %v147, %v145
    %v210 = vpack.c.b16 %v150, %v148
    %v211 = vpack.c.b16 %v151, %v149
    %v212 = vpack.c.b16 %v154, %v152
    %v213 = vpack.c.b16 %v155, %v153
    %v214 = vpack.c.b16 %v158, %v156
    %v215 = vpack.c.b16 %v159, %v157
    %v216 = vpack.c.b16 %v162, %v160
    %v217 = vpack.c.b16 %v163, %v161
    %v218 = vpack.c.b16 %v166, %v164
    %v219 = vpack.c.b16 %v167, %v165
    %v220 = vpack.c.b16 %v170, %v168
    %v221 = vpack.c.b16 %v171, %v169
    %v222 = vpack.c.b16 %v174, %v172
    %v223 = vpack.c.b16 %v175, %v173
    %v224 = vpack.c.b16 %v178, %v176
    %v225 = vpack.c.b16 %v179, %v177
    %v226 = vpack.c.b16 %v182, %v180
    %v227 = vpack.c.b16 %v183, %v181
    %v228 = vpack.c.b16 %v186, %v184
    %v229 = vpack.c.b16 %v187, %v185
    %v230 = vpack.c.b16 %v190, %v188
    %v231 = vpack.c.b16 %v191, %v189
    %v232 = vpack.c.b16 %v194, %v192
    %v233 = vpack.c.b16 %v195, %v193
    %v234 = vpack.c.b16 %v198, %v196
    %v235 = vpack.c.b16 %v199, %v197
    %v236 = vpack.c.b16 %v202, %v200
    %v237 = vpack.c.b16 %v203, %v201
    %v238 = vpack.c.b16 %v206, %v204
    %v239 = vpack.c.b16 %v207, %v205
    %272 = vmatprep.subr.bf16.mxu0 %v223
    %273 = vmatpush1.bf16.msra.mxu0 %v222
    %274 = vmatprep.subr.bf16.mxu0 %v221
    %275 = vmatpush1.bf16.msra.mxu0 %v220
    %276 = vmatprep.subr.bf16.mxu0 %v219
    %277 = vmatpush1.bf16.msra.mxu0 %v218
    %278 = vmatprep.subr.bf16.mxu0 %v217
    %279 = vmatpush1.bf16.msra.mxu0 %v216
    %280 = vmatprep.subr.bf16.mxu0 %v215
    %281 = vmatpush1.bf16.msra.mxu0 %v214
    %282 = vmatprep.subr.bf16.mxu0 %v213
    %283 = vmatpush1.bf16.msra.mxu0 %v212
    %284 = vmatprep.subr.bf16.mxu0 %v211
    %285 = vmatpush1.bf16.msra.mxu0 %v210
    %286 = vmatprep.subr.bf16.mxu0 %v209
    %287 = vmatpush1.bf16.msra.mxu0 %v208
    %288 = vmatprep.subr.bf16.mxu0 %v239
    %289 = vmatpush2.bf16.msra.mxu0 %v238
    %290 = vmatprep.subr.bf16.mxu0 %v237
    %291 = vmatpush2.bf16.msra.mxu0 %v236
    %292 = vmatprep.subr.bf16.mxu0 %v235
    %293 = vmatpush2.bf16.msra.mxu0 %v234
    %294 = vmatprep.subr.bf16.mxu0 %v233
    %295 = vmatpush2.bf16.msra.mxu0 %v232
    %296 = vmatprep.subr.bf16.mxu0 %v231
    %297 = vmatpush2.bf16.msra.mxu0 %v230
    %298 = vmatprep.subr.bf16.mxu0 %v229
    %299 = vmatpush2.bf16.msra.mxu0 %v228
    %300 = vmatprep.subr.bf16.mxu0 %v227
    %301 = vmatpush2.bf16.msra.mxu0 %v226
    %302 = vmatprep.subr.bf16.mxu0 %v225
    %303 = vmatpush2.bf16.msra.mxu0 %v224
    %304 = vmatprep.mubr.bf16.mxu0 %v109
    %305 = vmatmul.mubr.bf16.gmra.mxu0 %v108
    %v306 = vpop.f32.mrf.mxu0
    %v307 = vadd.f32 %v95, %v306
    %v308 = vpop.f32.mrf.mxu0
    %v309 = vadd.f32 %v99, %v308
    %v310 = vpop.f32.mrf.mxu0
    %v311 = vadd.f32 %v95, %v310
    %v312 = vpop.f32.mrf.mxu0
    %v313 = vadd.f32 %v99, %v312
    %314 = vdwg.mxu0
    %v315 = vpack.c.bf16 %v311, %v307
    %v316 = vpack.c.bf16 %v313, %v309
    %v319 = vunpack.c.l.b16 %v315
    %v320 = vunpack.c.l.b16 %v316
    %v321 = vunpack.c.h.b16 %v315
    %v322 = vunpack.c.h.b16 %v316
    %v323 = vpack.c.b16 %v320, %v319
    %v324 = vpack.c.b16 %v322, %v321
    %327 = vst [vmem:[#allocation2] sm:$0xff] %v323
    %328 = vst [vmem:[#allocation2 + $0x8] sm:$0xff] %v324
    %v329 = vld [vmem:[#allocation2] sm:$0xff]
    %v330 = vld [vmem:[#allocation2 + $0x8] sm:$0xff]
    %s331 = scalar_lea.vmem [#allocation7], 256
    %v332 = vld [vmem:[%s331] sm:$0xff]
    %v333 = vld [vmem:[%s331 + $0x8] sm:$0xff]
    %v334 = vld [vmem:[%s331 + $0x10] sm:$0xff]
    %v335 = vld [vmem:[%s331 + $0x18] sm:$0xff]
    %v336 = vld [vmem:[%s331 + $0x20] sm:$0xff]
    %v337 = vld [vmem:[%s331 + $0x28] sm:$0xff]
    %v338 = vld [vmem:[%s331 + $0x30] sm:$0xff]
    %v339 = vld [vmem:[%s331 + $0x38] sm:$0xff]
    %v340 = vld [vmem:[%s331 + $0x40] sm:$0xff]
    %v341 = vld [vmem:[%s331 + $0x48] sm:$0xff]
    %v342 = vld [vmem:[%s331 + $0x50] sm:$0xff]
    %v343 = vld [vmem:[%s331 + $0x58] sm:$0xff]
    %v344 = vld [vmem:[%s331 + $0x60] sm:$0xff]
    %v345 = vld [vmem:[%s331 + $0x68] sm:$0xff]
    %v346 = vld [vmem:[%s331 + $0x70] sm:$0xff]
    %v347 = vld [vmem:[%s331 + $0x78] sm:$0xff]
    %v348 = vld [vmem:[%s331 + $0x80] sm:$0xff]
    %v349 = vld [vmem:[%s331 + $0x88] sm:$0xff]
    %v350 = vld [vmem:[%s331 + $0x90] sm:$0xff]
    %v351 = vld [vmem:[%s331 + $0x98] sm:$0xff]
    %v352 = vld [vmem:[%s331 + $0xa0] sm:$0xff]
    %v353 = vld [vmem:[%s331 + $0xa8] sm:$0xff]
    %v354 = vld [vmem:[%s331 + $0xb0] sm:$0xff]
    %v355 = vld [vmem:[%s331 + $0xb8] sm:$0xff]
    %v356 = vld [vmem:[%s331 + $0xc0] sm:$0xff]
    %v357 = vld [vmem:[%s331 + $0xc8] sm:$0xff]
    %v358 = vld [vmem:[%s331 + $0xd0] sm:$0xff]
    %v359 = vld [vmem:[%s331 + $0xd8] sm:$0xff]
    %v360 = vld [vmem:[%s331 + $0xe0] sm:$0xff]
    %v361 = vld [vmem:[%s331 + $0xe8] sm:$0xff]
    %v362 = vld [vmem:[%s331 + $0xf0] sm:$0xff]
    %v363 = vld [vmem:[%s331 + $0xf8] sm:$0xff]
    %s364 = scalar_lea.vmem [#allocation9], 2
    %v365 = vld [vmem:[%s364] sm:$0x3]
    %v367 = vlaneseq
    %v368 = vshrl.u32 %v367, 7
    %v369 = vsub.s32 0, %v368
    %v370 = vrot.slane %v365, %v369
    %v371 = vlaneseq
    %v372 = vshrl.u32 %v371, 7
    %v373 = vsub.s32 1, %v372
    %v374 = vrot.slane %v365, %v373
    %v379 = vunpack.c.l.b16 %v329
    %v380 = vunpack.c.h.b16 %v329
    %v381 = vunpack.c.l.b16 %v330
    %v382 = vunpack.c.h.b16 %v330
    %v383 = vpack.c.b16 %v381, %v379
    %v384 = vpack.c.b16 %v382, %v380
    %v419 = vunpack.c.l.b16 %v332
    %v420 = vunpack.c.h.b16 %v332
    %v421 = vunpack.c.l.b16 %v333
    %v422 = vunpack.c.h.b16 %v333
    %v423 = vunpack.c.l.b16 %v334
    %v424 = vunpack.c.h.b16 %v334
    %v425 = vunpack.c.l.b16 %v335
    %v426 = vunpack.c.h.b16 %v335
    %v427 = vunpack.c.l.b16 %v336
    %v428 = vunpack.c.h.b16 %v336
    %v429 = vunpack.c.l.b16 %v337
    %v430 = vunpack.c.h.b16 %v337
    %v431 = vunpack.c.l.b16 %v338
    %v432 = vunpack.c.h.b16 %v338
    %v433 = vunpack.c.l.b16 %v339
    %v434 = vunpack.c.h.b16 %v339
    %v435 = vunpack.c.l.b16 %v340
    %v436 = vunpack.c.h.b16 %v340
    %v437 = vunpack.c.l.b16 %v341
    %v438 = vunpack.c.h.b16 %v341
    %v439 = vunpack.c.l.b16 %v342
    %v440 = vunpack.c.h.b16 %v342
    %v441 = vunpack.c.l.b16 %v343
    %v442 = vunpack.c.h.b16 %v343
    %v443 = vunpack.c.l.b16 %v344
    %v444 = vunpack.c.h.b16 %v344
    %v445 = vunpack.c.l.b16 %v345
    %v446 = vunpack.c.h.b16 %v345
    %v447 = vunpack.c.l.b16 %v346
    %v448 = vunpack.c.h.b16 %v346
    %v449 = vunpack.c.l.b16 %v347
    %v450 = vunpack.c.h.b16 %v347
    %v451 = vunpack.c.l.b16 %v348
    %v452 = vunpack.c.h.b16 %v348
    %v453 = vunpack.c.l.b16 %v349
    %v454 = vunpack.c.h.b16 %v349
    %v455 = vunpack.c.l.b16 %v350
    %v456 = vunpack.c.h.b16 %v350
    %v457 = vunpack.c.l.b16 %v351
    %v458 = vunpack.c.h.b16 %v351
    %v459 = vunpack.c.l.b16 %v352
    %v460 = vunpack.c.h.b16 %v352
    %v461 = vunpack.c.l.b16 %v353
    %v462 = vunpack.c.h.b16 %v353
    %v463 = vunpack.c.l.b16 %v354
    %v464 = vunpack.c.h.b16 %v354
    %v465 = vunpack.c.l.b16 %v355
    %v466 = vunpack.c.h.b16 %v355
    %v467 = vunpack.c.l.b16 %v356
    %v468 = vunpack.c.h.b16 %v356
    %v469 = vunpack.c.l.b16 %v357
    %v470 = vunpack.c.h.b16 %v357
    %v471 = vunpack.c.l.b16 %v358
    %v472 = vunpack.c.h.b16 %v358
    %v473 = vunpack.c.l.b16 %v359
    %v474 = vunpack.c.h.b16 %v359
    %v475 = vunpack.c.l.b16 %v360
    %v476 = vunpack.c.h.b16 %v360
    %v477 = vunpack.c.l.b16 %v361
    %v478 = vunpack.c.h.b16 %v361
    %v479 = vunpack.c.l.b16 %v362
    %v480 = vunpack.c.h.b16 %v362
    %v481 = vunpack.c.l.b16 %v363
    %v482 = vunpack.c.h.b16 %v363
    %v483 = vpack.c.b16 %v421, %v419
    %v484 = vpack.c.b16 %v422, %v420
    %v485 = vpack.c.b16 %v425, %v423
    %v486 = vpack.c.b16 %v426, %v424
    %v487 = vpack.c.b16 %v429, %v427
    %v488 = vpack.c.b16 %v430, %v428
    %v489 = vpack.c.b16 %v433, %v431
    %v490 = vpack.c.b16 %v434, %v432
    %v491 = vpack.c.b16 %v437, %v435
    %v492 = vpack.c.b16 %v438, %v436
    %v493 = vpack.c.b16 %v441, %v439
    %v494 = vpack.c.b16 %v442, %v440
    %v495 = vpack.c.b16 %v445, %v443
    %v496 = vpack.c.b16 %v446, %v444
    %v497 = vpack.c.b16 %v449, %v447
    %v498 = vpack.c.b16 %v450, %v448
    %v499 = vpack.c.b16 %v453, %v451
    %v500 = vpack.c.b16 %v454, %v452
    %v501 = vpack.c.b16 %v457, %v455
    %v502 = vpack.c.b16 %v458, %v456
    %v503 = vpack.c.b16 %v461, %v459
    %v504 = vpack.c.b16 %v462, %v460
    %v505 = vpack.c.b16 %v465, %v463
    %v506 = vpack.c.b16 %v466, %v464
    %v507 = vpack.c.b16 %v469, %v467
    %v508 = vpack.c.b16 %v470, %v468
    %v509 = vpack.c.b16 %v473, %v471
    %v510 = vpack.c.b16 %v474, %v472
    %v511 = vpack.c.b16 %v477, %v475
    %v512 = vpack.c.b16 %v478, %v476
    %v513 = vpack.c.b16 %v481, %v479
    %v514 = vpack.c.b16 %v482, %v480
    %547 = vmatprep.subr.bf16.mxu0 %v498
    %548 = vmatpush1.bf16.msra.mxu0 %v497
    %549 = vmatprep.subr.bf16.mxu0 %v496
    %550 = vmatpush1.bf16.msra.mxu0 %v495
    %551 = vmatprep.subr.bf16.mxu0 %v494
    %552 = vmatpush1.bf16.msra.mxu0 %v493
    %553 = vmatprep.subr.bf16.mxu0 %v492
    %554 = vmatpush1.bf16.msra.mxu0 %v491
    %555 = vmatprep.subr.bf16.mxu0 %v490
    %556 = vmatpush1.bf16.msra.mxu0 %v489
    %557 = vmatprep.subr.bf16.mxu0 %v488
    %558 = vmatpush1.bf16.msra.mxu0 %v487
    %559 = vmatprep.subr.bf16.mxu0 %v486
    %560 = vmatpush1.bf16.msra.mxu0 %v485
    %561 = vmatprep.subr.bf16.mxu0 %v484
    %562 = vmatpush1.bf16.msra.mxu0 %v483
    %563 = vmatprep.subr.bf16.mxu0 %v514
    %564 = vmatpush2.bf16.msra.mxu0 %v513
    %565 = vmatprep.subr.bf16.mxu0 %v512
    %566 = vmatpush2.bf16.msra.mxu0 %v511
    %567 = vmatprep.subr.bf16.mxu0 %v510
    %568 = vmatpush2.bf16.msra.mxu0 %v509
    %569 = vmatprep.subr.bf16.mxu0 %v508
    %570 = vmatpush2.bf16.msra.mxu0 %v507
    %571 = vmatprep.subr.bf16.mxu0 %v506
    %572 = vmatpush2.bf16.msra.mxu0 %v505
    %573 = vmatprep.subr.bf16.mxu0 %v504
    %574 = vmatpush2.bf16.msra.mxu0 %v503
    %575 = vmatprep.subr.bf16.mxu0 %v502
    %576 = vmatpush2.bf16.msra.mxu0 %v501
    %577 = vmatprep.subr.bf16.mxu0 %v500
    %578 = vmatpush2.bf16.msra.mxu0 %v499
    %579 = vmatprep.mubr.bf16.mxu0 %v384
    %580 = vmatmul.mubr.bf16.gmra.mxu0 %v383
    %v581 = vpop.f32.mrf.mxu0
    %v582 = vadd.f32 %v370, %v581
    %v583 = vpop.f32.mrf.mxu0
    %v584 = vadd.f32 %v374, %v583
    %v585 = vpop.f32.mrf.mxu0
    %v586 = vadd.f32 %v370, %v585
    %v587 = vpop.f32.mrf.mxu0
    %v588 = vadd.f32 %v374, %v587
    %589 = vdwg.mxu0
    %v590 = vpack.c.bf16 %v586, %v582
    %v591 = vpack.c.bf16 %v588, %v584
    %v594 = vunpack.c.l.b16 %v590
    %v595 = vunpack.c.l.b16 %v591
    %v596 = vunpack.c.h.b16 %v590
    %v597 = vunpack.c.h.b16 %v591
    %v598 = vpack.c.b16 %v595, %v594
    %v599 = vpack.c.b16 %v597, %v596
    %602 = vst [vmem:[#allocation3] sm:$0xff] %v598
    %603 = vst [vmem:[#allocation3 + $0x8] sm:$0xff] %v599
    %v604 = vld [vmem:[#allocation3] sm:$0xff]
    %v605 = vld [vmem:[#allocation3 + $0x8] sm:$0xff]
    %s606 = scalar_lea.vmem [#allocation7], 512
    %v607 = vld [vmem:[%s606] sm:$0xff]
    %v608 = vld [vmem:[%s606 + $0x8] sm:$0xff]
    %v609 = vld [vmem:[%s606 + $0x10] sm:$0xff]
    %v610 = vld [vmem:[%s606 + $0x18] sm:$0xff]
    %v611 = vld [vmem:[%s606 + $0x20] sm:$0xff]
    %v612 = vld [vmem:[%s606 + $0x28] sm:$0xff]
    %v613 = vld [vmem:[%s606 + $0x30] sm:$0xff]
    %v614 = vld [vmem:[%s606 + $0x38] sm:$0xff]
    %v615 = vld [vmem:[%s606 + $0x40] sm:$0xff]
    %v616 = vld [vmem:[%s606 + $0x48] sm:$0xff]
    %v617 = vld [vmem:[%s606 + $0x50] sm:$0xff]
    %v618 = vld [vmem:[%s606 + $0x58] sm:$0xff]
    %v619 = vld [vmem:[%s606 + $0x60] sm:$0xff]
    %v620 = vld [vmem:[%s606 + $0x68] sm:$0xff]
    %v621 = vld [vmem:[%s606 + $0x70] sm:$0xff]
    %v622 = vld [vmem:[%s606 + $0x78] sm:$0xff]
    %v623 = vld [vmem:[%s606 + $0x80] sm:$0xff]
    %v624 = vld [vmem:[%s606 + $0x88] sm:$0xff]
    %v625 = vld [vmem:[%s606 + $0x90] sm:$0xff]
    %v626 = vld [vmem:[%s606 + $0x98] sm:$0xff]
    %v627 = vld [vmem:[%s606 + $0xa0] sm:$0xff]
    %v628 = vld [vmem:[%s606 + $0xa8] sm:$0xff]
    %v629 = vld [vmem:[%s606 + $0xb0] sm:$0xff]
    %v630 = vld [vmem:[%s606 + $0xb8] sm:$0xff]
    %v631 = vld [vmem:[%s606 + $0xc0] sm:$0xff]
    %v632 = vld [vmem:[%s606 + $0xc8] sm:$0xff]
    %v633 = vld [vmem:[%s606 + $0xd0] sm:$0xff]
    %v634 = vld [vmem:[%s606 + $0xd8] sm:$0xff]
    %v635 = vld [vmem:[%s606 + $0xe0] sm:$0xff]
    %v636 = vld [vmem:[%s606 + $0xe8] sm:$0xff]
    %v637 = vld [vmem:[%s606 + $0xf0] sm:$0xff]
    %v638 = vld [vmem:[%s606 + $0xf8] sm:$0xff]
    %s639 = scalar_lea.vmem [#allocation9], 4
    %v640 = vld [vmem:[%s639] sm:$0x3]
    %v642 = vlaneseq
    %v643 = vshrl.u32 %v642, 7
    %v644 = vsub.s32 0, %v643
    %v645 = vrot.slane %v640, %v644
    %v646 = vlaneseq
    %v647 = vshrl.u32 %v646, 7
    %v648 = vsub.s32 1, %v647
    %v649 = vrot.slane %v640, %v648
    %v654 = vunpack.c.l.b16 %v604
    %v655 = vunpack.c.h.b16 %v604
    %v656 = vunpack.c.l.b16 %v605
    %v657 = vunpack.c.h.b16 %v605
    %v658 = vpack.c.b16 %v656, %v654
    %v659 = vpack.c.b16 %v657, %v655
    %v694 = vunpack.c.l.b16 %v607
    %v695 = vunpack.c.h.b16 %v607
    %v696 = vunpack.c.l.b16 %v608
    %v697 = vunpack.c.h.b16 %v608
    %v698 = vunpack.c.l.b16 %v609
    %v699 = vunpack.c.h.b16 %v609
    %v700 = vunpack.c.l.b16 %v610
    %v701 = vunpack.c.h.b16 %v610
    %v702 = vunpack.c.l.b16 %v611
    %v703 = vunpack.c.h.b16 %v611
    %v704 = vunpack.c.l.b16 %v612
    %v705 = vunpack.c.h.b16 %v612
    %v706 = vunpack.c.l.b16 %v613
    %v707 = vunpack.c.h.b16 %v613
    %v708 = vunpack.c.l.b16 %v614
    %v709 = vunpack.c.h.b16 %v614
    %v710 = vunpack.c.l.b16 %v615
    %v711 = vunpack.c.h.b16 %v615
    %v712 = vunpack.c.l.b16 %v616
    %v713 = vunpack.c.h.b16 %v616
    %v714 = vunpack.c.l.b16 %v617
    %v715 = vunpack.c.h.b16 %v617
    %v716 = vunpack.c.l.b16 %v618
    %v717 = vunpack.c.h.b16 %v618
    %v718 = vunpack.c.l.b16 %v619
    %v719 = vunpack.c.h.b16 %v619
    %v720 = vunpack.c.l.b16 %v620
    %v721 = vunpack.c.h.b16 %v620
    %v722 = vunpack.c.l.b16 %v621
    %v723 = vunpack.c.h.b16 %v621
    %v724 = vunpack.c.l.b16 %v622
    %v725 = vunpack.c.h.b16 %v622
    %v726 = vunpack.c.l.b16 %v623
    %v727 = vunpack.c.h.b16 %v623
    %v728 = vunpack.c.l.b16 %v624
    %v729 = vunpack.c.h.b16 %v624
    %v730 = vunpack.c.l.b16 %v625
    %v731 = vunpack.c.h.b16 %v625
    %v732 = vunpack.c.l.b16 %v626
    %v733 = vunpack.c.h.b16 %v626
    %v734 = vunpack.c.l.b16 %v627
    %v735 = vunpack.c.h.b16 %v627
    %v736 = vunpack.c.l.b16 %v628
    %v737 = vunpack.c.h.b16 %v628
    %v738 = vunpack.c.l.b16 %v629
    %v739 = vunpack.c.h.b16 %v629
    %v740 = vunpack.c.l.b16 %v630
    %v741 = vunpack.c.h.b16 %v630
    %v742 = vunpack.c.l.b16 %v631
    %v743 = vunpack.c.h.b16 %v631
    %v744 = vunpack.c.l.b16 %v632
    %v745 = vunpack.c.h.b16 %v632
    %v746 = vunpack.c.l.b16 %v633
    %v747 = vunpack.c.h.b16 %v633
    %v748 = vunpack.c.l.b16 %v634
    %v749 = vunpack.c.h.b16 %v634
    %v750 = vunpack.c.l.b16 %v635
    %v751 = vunpack.c.h.b16 %v635
    %v752 = vunpack.c.l.b16 %v636
    %v753 = vunpack.c.h.b16 %v636
    %v754 = vunpack.c.l.b16 %v637
    %v755 = vunpack.c.h.b16 %v637
    %v756 = vunpack.c.l.b16 %v638
    %v757 = vunpack.c.h.b16 %v638
    %v758 = vpack.c.b16 %v696, %v694
    %v759 = vpack.c.b16 %v697, %v695
    %v760 = vpack.c.b16 %v700, %v698
    %v761 = vpack.c.b16 %v701, %v699
    %v762 = vpack.c.b16 %v704, %v702
    %v763 = vpack.c.b16 %v705, %v703
    %v764 = vpack.c.b16 %v708, %v706
    %v765 = vpack.c.b16 %v709, %v707
    %v766 = vpack.c.b16 %v712, %v710
    %v767 = vpack.c.b16 %v713, %v711
    %v768 = vpack.c.b16 %v716, %v714
    %v769 = vpack.c.b16 %v717, %v715
    %v770 = vpack.c.b16 %v720, %v718
    %v771 = vpack.c.b16 %v721, %v719
    %v772 = vpack.c.b16 %v724, %v722
    %v773 = vpack.c.b16 %v725, %v723
    %v774 = vpack.c.b16 %v728, %v726
    %v775 = vpack.c.b16 %v729, %v727
    %v776 = vpack.c.b16 %v732, %v730
    %v777 = vpack.c.b16 %v733, %v731
    %v778 = vpack.c.b16 %v736, %v734
    %v779 = vpack.c.b16 %v737, %v735
    %v780 = vpack.c.b16 %v740, %v738
    %v781 = vpack.c.b16 %v741, %v739
    %v782 = vpack.c.b16 %v744, %v742
    %v783 = vpack.c.b16 %v745, %v743
    %v784 = vpack.c.b16 %v748, %v746
    %v785 = vpack.c.b16 %v749, %v747
    %v786 = vpack.c.b16 %v752, %v750
    %v787 = vpack.c.b16 %v753, %v751
    %v788 = vpack.c.b16 %v756, %v754
    %v789 = vpack.c.b16 %v757, %v755
    %822 = vmatprep.subr.bf16.mxu0 %v773
    %823 = vmatpush1.bf16.msra.mxu0 %v772
    %824 = vmatprep.subr.bf16.mxu0 %v771
    %825 = vmatpush1.bf16.msra.mxu0 %v770
    %826 = vmatprep.subr.bf16.mxu0 %v769
    %827 = vmatpush1.bf16.msra.mxu0 %v768
    %828 = vmatprep.subr.bf16.mxu0 %v767
    %829 = vmatpush1.bf16.msra.mxu0 %v766
    %830 = vmatprep.subr.bf16.mxu0 %v765
    %831 = vmatpush1.bf16.msra.mxu0 %v764
    %832 = vmatprep.subr.bf16.mxu0 %v763
    %833 = vmatpush1.bf16.msra.mxu0 %v762
    %834 = vmatprep.subr.bf16.mxu0 %v761
    %835 = vmatpush1.bf16.msra.mxu0 %v760
    %836 = vmatprep.subr.bf16.mxu0 %v759
    %837 = vmatpush1.bf16.msra.mxu0 %v758
    %838 = vmatprep.subr.bf16.mxu0 %v789
    %839 = vmatpush2.bf16.msra.mxu0 %v788
    %840 = vmatprep.subr.bf16.mxu0 %v787
    %841 = vmatpush2.bf16.msra.mxu0 %v786
    %842 = vmatprep.subr.bf16.mxu0 %v785
    %843 = vmatpush2.bf16.msra.mxu0 %v784
    %844 = vmatprep.subr.bf16.mxu0 %v783
    %845 = vmatpush2.bf16.msra.mxu0 %v782
    %846 = vmatprep.subr.bf16.mxu0 %v781
    %847 = vmatpush2.bf16.msra.mxu0 %v780
    %848 = vmatprep.subr.bf16.mxu0 %v779
    %849 = vmatpush2.bf16.msra.mxu0 %v778
    %850 = vmatprep.subr.bf16.mxu0 %v777
    %851 = vmatpush2.bf16.msra.mxu0 %v776
    %852 = vmatprep.subr.bf16.mxu0 %v775
    %853 = vmatpush2.bf16.msra.mxu0 %v774
    %854 = vmatprep.mubr.bf16.mxu0 %v659
    %855 = vmatmul.mubr.bf16.gmra.mxu0 %v658
    %v856 = vpop.f32.mrf.mxu0
    %v857 = vadd.f32 %v645, %v856
    %v858 = vpop.f32.mrf.mxu0
    %v859 = vadd.f32 %v649, %v858
    %v860 = vpop.f32.mrf.mxu0
    %v861 = vadd.f32 %v645, %v860
    %v862 = vpop.f32.mrf.mxu0
    %v863 = vadd.f32 %v649, %v862
    %864 = vdwg.mxu0
    %v865 = vpack.c.bf16 %v861, %v857
    %v866 = vpack.c.bf16 %v863, %v859
    %v869 = vunpack.c.l.b16 %v865
    %v870 = vunpack.c.l.b16 %v866
    %v871 = vunpack.c.h.b16 %v865
    %v872 = vunpack.c.h.b16 %v866
    %v873 = vpack.c.b16 %v870, %v869
    %v874 = vpack.c.b16 %v872, %v871
    %877 = vst [vmem:[#allocation2] sm:$0xff] %v873
    %878 = vst [vmem:[#allocation2 + $0x8] sm:$0xff] %v874
    %v879 = vld [vmem:[#allocation2] sm:$0xff]
    %v880 = vld [vmem:[#allocation2 + $0x8] sm:$0xff]
    %s881 = scalar_lea.vmem [#allocation7], 768
    %v882 = vld [vmem:[%s881] sm:$0xff]
    %v883 = vld [vmem:[%s881 + $0x8] sm:$0xff]
    %v884 = vld [vmem:[%s881 + $0x10] sm:$0xff]
    %v885 = vld [vmem:[%s881 + $0x18] sm:$0xff]
    %v886 = vld [vmem:[%s881 + $0x20] sm:$0xff]
    %v887 = vld [vmem:[%s881 + $0x28] sm:$0xff]
    %v888 = vld [vmem:[%s881 + $0x30] sm:$0xff]
    %v889 = vld [vmem:[%s881 + $0x38] sm:$0xff]
    %v890 = vld [vmem:[%s881 + $0x40] sm:$0xff]
    %v891 = vld [vmem:[%s881 + $0x48] sm:$0xff]
    %v892 = vld [vmem:[%s881 + $0x50] sm:$0xff]
    %v893 = vld [vmem:[%s881 + $0x58] sm:$0xff]
    %v894 = vld [vmem:[%s881 + $0x60] sm:$0xff]
    %v895 = vld [vmem:[%s881 + $0x68] sm:$0xff]
    %v896 = vld [vmem:[%s881 + $0x70] sm:$0xff]
    %v897 = vld [vmem:[%s881 + $0x78] sm:$0xff]
    %v898 = vld [vmem:[%s881 + $0x80] sm:$0xff]
    %v899 = vld [vmem:[%s881 + $0x88] sm:$0xff]
    %v900 = vld [vmem:[%s881 + $0x90] sm:$0xff]
    %v901 = vld [vmem:[%s881 + $0x98] sm:$0xff]
    %v902 = vld [vmem:[%s881 + $0xa0] sm:$0xff]
    %v903 = vld [vmem:[%s881 + $0xa8] sm:$0xff]
    %v904 = vld [vmem:[%s881 + $0xb0] sm:$0xff]
    %v905 = vld [vmem:[%s881 + $0xb8] sm:$0xff]
    %v906 = vld [vmem:[%s881 + $0xc0] sm:$0xff]
    %v907 = vld [vmem:[%s881 + $0xc8] sm:$0xff]
    %v908 = vld [vmem:[%s881 + $0xd0] sm:$0xff]
    %v909 = vld [vmem:[%s881 + $0xd8] sm:$0xff]
    %v910 = vld [vmem:[%s881 + $0xe0] sm:$0xff]
    %v911 = vld [vmem:[%s881 + $0xe8] sm:$0xff]
    %v912 = vld [vmem:[%s881 + $0xf0] sm:$0xff]
    %v913 = vld [vmem:[%s881 + $0xf8] sm:$0xff]
    %s914 = scalar_lea.vmem [#allocation9], 6
    %v915 = vld [vmem:[%s914] sm:$0x3]
    %v917 = vlaneseq
    %v918 = vshrl.u32 %v917, 7
    %v919 = vsub.s32 0, %v918
    %v920 = vrot.slane %v915, %v919
    %v921 = vlaneseq
    %v922 = vshrl.u32 %v921, 7
    %v923 = vsub.s32 1, %v922
    %v924 = vrot.slane %v915, %v923
    %v929 = vunpack.c.l.b16 %v879
    %v930 = vunpack.c.h.b16 %v879
    %v931 = vunpack.c.l.b16 %v880
    %v932 = vunpack.c.h.b16 %v880
    %v933 = vpack.c.b16 %v931, %v929
    %v934 = vpack.c.b16 %v932, %v930
    %v969 = vunpack.c.l.b16 %v882
    %v970 = vunpack.c.h.b16 %v882
    %v971 = vunpack.c.l.b16 %v883
    %v972 = vunpack.c.h.b16 %v883
    %v973 = vunpack.c.l.b16 %v884
    %v974 = vunpack.c.h.b16 %v884
    %v975 = vunpack.c.l.b16 %v885
    %v976 = vunpack.c.h.b16 %v885
    %v977 = vunpack.c.l.b16 %v886
    %v978 = vunpack.c.h.b16 %v886
    %v979 = vunpack.c.l.b16 %v887
    %v980 = vunpack.c.h.b16 %v887
    %v981 = vunpack.c.l.b16 %v888
    %v982 = vunpack.c.h.b16 %v888
    %v983 = vunpack.c.l.b16 %v889
    %v984 = vunpack.c.h.b16 %v889
    %v985 = vunpack.c.l.b16 %v890
    %v986 = vunpack.c.h.b16 %v890
    %v987 = vunpack.c.l.b16 %v891
    %v988 = vunpack.c.h.b16 %v891
    %v989 = vunpack.c.l.b16 %v892
    %v990 = vunpack.c.h.b16 %v892
    %v991 = vunpack.c.l.b16 %v893
    %v992 = vunpack.c.h.b16 %v893
    %v993 = vunpack.c.l.b16 %v894
    %v994 = vunpack.c.h.b16 %v894
    %v995 = vunpack.c.l.b16 %v895
    %v996 = vunpack.c.h.b16 %v895
    %v997 = vunpack.c.l.b16 %v896
    %v998 = vunpack.c.h.b16 %v896
    %v999 = vunpack.c.l.b16 %v897
    %v1000 = vunpack.c.h.b16 %v897
    %v1001 = vunpack.c.l.b16 %v898
    %v1002 = vunpack.c.h.b16 %v898
    %v1003 = vunpack.c.l.b16 %v899
    %v1004 = vunpack.c.h.b16 %v899
    %v1005 = vunpack.c.l.b16 %v900
    %v1006 = vunpack.c.h.b16 %v900
    %v1007 = vunpack.c.l.b16 %v901
    %v1008 = vunpack.c.h.b16 %v901
    %v1009 = vunpack.c.l.b16 %v902
    %v1010 = vunpack.c.h.b16 %v902
    %v1011 = vunpack.c.l.b16 %v903
    %v1012 = vunpack.c.h.b16 %v903
    %v1013 = vunpack.c.l.b16 %v904
    %v1014 = vunpack.c.h.b16 %v904
    %v1015 = vunpack.c.l.b16 %v905
    %v1016 = vunpack.c.h.b16 %v905
    %v1017 = vunpack.c.l.b16 %v906
    %v1018 = vunpack.c.h.b16 %v906
    %v1019 = vunpack.c.l.b16 %v907
    %v1020 = vunpack.c.h.b16 %v907
    %v1021 = vunpack.c.l.b16 %v908
    %v1022 = vunpack.c.h.b16 %v908
    %v1023 = vunpack.c.l.b16 %v909
    %v1024 = vunpack.c.h.b16 %v909
    %v1025 = vunpack.c.l.b16 %v910
    %v1026 = vunpack.c.h.b16 %v910
    %v1027 = vunpack.c.l.b16 %v911
    %v1028 = vunpack.c.h.b16 %v911
    %v1029 = vunpack.c.l.b16 %v912
    %v1030 = vunpack.c.h.b16 %v912
    %v1031 = vunpack.c.l.b16 %v913
    %v1032 = vunpack.c.h.b16 %v913
    %v1033 = vpack.c.b16 %v971, %v969
    %v1034 = vpack.c.b16 %v972, %v970
    %v1035 = vpack.c.b16 %v975, %v973
    %v1036 = vpack.c.b16 %v976, %v974
    %v1037 = vpack.c.b16 %v979, %v977
    %v1038 = vpack.c.b16 %v980, %v978
    %v1039 = vpack.c.b16 %v983, %v981
    %v1040 = vpack.c.b16 %v984, %v982
    %v1041 = vpack.c.b16 %v987, %v985
    %v1042 = vpack.c.b16 %v988, %v986
    %v1043 = vpack.c.b16 %v991, %v989
    %v1044 = vpack.c.b16 %v992, %v990
    %v1045 = vpack.c.b16 %v995, %v993
    %v1046 = vpack.c.b16 %v996, %v994
    %v1047 = vpack.c.b16 %v999, %v997
    %v1048 = vpack.c.b16 %v1000, %v998
    %v1049 = vpack.c.b16 %v1003, %v1001
    %v1050 = vpack.c.b16 %v1004, %v1002
    %v1051 = vpack.c.b16 %v1007, %v1005
    %v1052 = vpack.c.b16 %v1008, %v1006
    %v1053 = vpack.c.b16 %v1011, %v1009
    %v1054 = vpack.c.b16 %v1012, %v1010
    %v1055 = vpack.c.b16 %v1015, %v1013
    %v1056 = vpack.c.b16 %v1016, %v1014
    %v1057 = vpack.c.b16 %v1019, %v1017
    %v1058 = vpack.c.b16 %v1020, %v1018
    %v1059 = vpack.c.b16 %v1023, %v1021
    %v1060 = vpack.c.b16 %v1024, %v1022
    %v1061 = vpack.c.b16 %v1027, %v1025
    %v1062 = vpack.c.b16 %v1028, %v1026
    %v1063 = vpack.c.b16 %v1031, %v1029
    %v1064 = vpack.c.b16 %v1032, %v1030
    %1097 = vmatprep.subr.bf16.mxu0 %v1048
    %1098 = vmatpush1.bf16.msra.mxu0 %v1047
    %1099 = vmatprep.subr.bf16.mxu0 %v1046
    %1100 = vmatpush1.bf16.msra.mxu0 %v1045
    %1101 = vmatprep.subr.bf16.mxu0 %v1044
    %1102 = vmatpush1.bf16.msra.mxu0 %v1043
    %1103 = vmatprep.subr.bf16.mxu0 %v1042
    %1104 = vmatpush1.bf16.msra.mxu0 %v1041
    %1105 = vmatprep.subr.bf16.mxu0 %v1040
    %1106 = vmatpush1.bf16.msra.mxu0 %v1039
    %1107 = vmatprep.subr.bf16.mxu0 %v1038
    %1108 = vmatpush1.bf16.msra.mxu0 %v1037
    %1109 = vmatprep.subr.bf16.mxu0 %v1036
    %1110 = vmatpush1.bf16.msra.mxu0 %v1035
    %1111 = vmatprep.subr.bf16.mxu0 %v1034
    %1112 = vmatpush1.bf16.msra.mxu0 %v1033
    %1113 = vmatprep.subr.bf16.mxu0 %v1064
    %1114 = vmatpush2.bf16.msra.mxu0 %v1063
    %1115 = vmatprep.subr.bf16.mxu0 %v1062
    %1116 = vmatpush2.bf16.msra.mxu0 %v1061
    %1117 = vmatprep.subr.bf16.mxu0 %v1060
    %1118 = vmatpush2.bf16.msra.mxu0 %v1059
    %1119 = vmatprep.subr.bf16.mxu0 %v1058
    %1120 = vmatpush2.bf16.msra.mxu0 %v1057
    %1121 = vmatprep.subr.bf16.mxu0 %v1056
    %1122 = vmatpush2.bf16.msra.mxu0 %v1055
    %1123 = vmatprep.subr.bf16.mxu0 %v1054
    %1124 = vmatpush2.bf16.msra.mxu0 %v1053
    %1125 = vmatprep.subr.bf16.mxu0 %v1052
    %1126 = vmatpush2.bf16.msra.mxu0 %v1051
    %1127 = vmatprep.subr.bf16.mxu0 %v1050
    %1128 = vmatpush2.bf16.msra.mxu0 %v1049
    %1129 = vmatprep.mubr.bf16.mxu0 %v934
    %1130 = vmatmul.mubr.bf16.gmra.mxu0 %v933
    %v1131 = vpop.f32.mrf.mxu0
    %v1132 = vadd.f32 %v920, %v1131
    %v1133 = vpop.f32.mrf.mxu0
    %v1134 = vadd.f32 %v924, %v1133
    %v1135 = vpop.f32.mrf.mxu0
    %v1136 = vadd.f32 %v920, %v1135
    %v1137 = vpop.f32.mrf.mxu0
    %v1138 = vadd.f32 %v924, %v1137
    %1139 = vdwg.mxu0
    %1140 = vst [vmem:[#allocation10] sm:$0xff] %v1132
    %1141 = vst [vmem:[#allocation10 + $0x8] sm:$0xff] %v1134
    %1142 = vst [vmem:[#allocation10 + $0x10] sm:$0xff] %v1136
    %1143 = vst [vmem:[#allocation10 + $0x18] sm:$0xff] %v1138
    // Predicated region
    $region26: #{tpu_custom_call.1} parent=1 // pred_check
      _
    $region27: #{tpu_custom_call.1} parent=1 // pred_check_branch
      %1145 = sbr.rel (0) target = $region29
    $region28: #{tpu_custom_call.1} parent=1 // pred_region
      %s1147 = ssub.s32 512, 512
      %1148 = vsyncadd [#allocation6], %s1147
      %s1149 = sshll.u32 [#allocation10], 4
      %s1150 = int_to_ptr.vmem [resolvable:$true] %s1149
      %1155 = dma.vmem_to_hbm [thread:$0]  %s1150, 512, %s3, [#allocation6], 256, 256, 16
    $region29: #{tpu_custom_call.1} parent=1 // pred_fallthru
      _
    // Predicated region
    $region30: #{tpu_custom_call.1} parent=1 // pred_check
      _
    $region31: #{tpu_custom_call.1} parent=1 // pred_check_branch
      %1157 = sbr.rel (0) target = $region33
    $region32: #{tpu_custom_call.1} parent=1 // pred_region
      %1158 = dma.done [#allocation6], 512
    $region33: #{tpu_custom_call.1} parent=1 // pred_fallthru
      _
    %1159 = vsyncpa [#allocation5], 1
    %1160 = vsyncpa [#allocation8], 1
    %1161 = vsyncpa [#allocation6], 1

// kernel: tpu_custom_call.1
$region0: #{tpu_custom_call.1}
  #allocation0 [shape = 'u32[]', space=smem, size = 0x4, offset = 0x4, fixed_abs, tag = 'smem constant byte address 0x4 - core index']
  #allocation1 [shape = 'u32[144,128]{1,0:T(1,128)}', space=vmem, size = 0x12000, scoped, tag = 'internal scratch']
  #allocation2 [shape = 'bf16[16,256]{1,0:T(8,128)(2,1)}', space=vmem, size = 0x2000, scoped, tag = 'scratch operand']
  #allocation3 [shape = 'bf16[16,256]{1,0:T(8,128)(2,1)}', space=vmem, size = 0x2000, scoped, tag = 'scratch operand']
  %s0 = inlined_call_operand.hbm [shape: bf16[16,256], index: 0, kind: input, shape index: {}]
  %s1 = inlined_call_operand.hbm [shape: bf16[4,256,256], index: 1, kind: input, shape index: {}]
  %s2 = inlined_call_operand.hbm [shape: f32[4,1,256], index: 2, kind: input, shape index: {}]
  %s3 = inlined_call_operand.hbm [shape: f32[16,256], index: 3, kind: output, shape index: {}]
  %s4 = sld [smem:[#allocation0]]
  $region34: #{tpu_custom_call.1} parent=0
    _
  %s6 = ssub.s32 1, %s4
  %s7 = scalar_select 0, %s6, %s4
  $region1: #{tpu_custom_call.1} parent=0
    #allocation4 [shape = 'u8[8192]{0}', space=vmem, size = 0x2000, scoped, tag = 'input window, operand 0, single buffered']
    #allocation5 [shape = 's32[1]{0}', space=sflag, size = 0x4, scoped, tag = 'scoped memory for tpu_custom_call.1']
    #allocation6 [shape = 's32[1]{0}', space=sflag, size = 0x4, scoped, tag = 'scoped memory for tpu_custom_call.1']
    #allocation7 [shape = 'u8[524288]{0}', space=vmem, size = 0x80000, scoped, tag = 'input window, operand 1, single buffered']
    #allocation8 [shape = 's32[1]{0}', space=sflag, size = 0x4, scoped, tag = 'scoped memory for tpu_custom_call.1']
    #allocation9 [shape = 'u8[4096]{0}', space=vmem, size = 0x1000, scoped, tag = 'input window, operand 2, single buffered']
    #allocation10 [shape = 'u8[16384]{0}', space=vmem, size = 0x4000, scoped, tag = 'output window, operand 0, single buffered']
    %8 = vsyncpa [#allocation5], 0
    %9 = vsyncpa [#allocation8], 0
    %10 = vsyncpa [#allocation6], 0
    // Predicated region
    $region2: #{tpu_custom_call.1} parent=1 // pred_check
      _
    $region3: #{tpu_custom_call.1} parent=1 // pred_check_branch
      %12 = sbr.rel (0) target = $region5
    $region4: #{tpu_custom_call.1} parent=1 // pred_region
      %s14 = ssub.s32 256, 256
      %15 = vsyncadd [#allocation5], %s14
      %s16 = sshll.u32 [#allocation4], 4
      %s17 = int_to_ptr.vmem [resolvable:$true] %s16
      %22 = dma.hbm_to_vmem [thread:$0]  %s0, 256, %s17, [#allocation5], 128, 128, 8
    $region5: #{tpu_custom_call.1} parent=1 // pred_fallthru
      _
    // Predicated region
    $region6: #{tpu_custom_call.1} parent=1 // pred_check
      _
    $region7: #{tpu_custom_call.1} parent=1 // pred_check_branch
      %24 = sbr.rel (0) target = $region9
    $region8: #{tpu_custom_call.1} parent=1 // pred_region
      %s26 = ssub.s32 16384, 16384
      %27 = vsyncadd [#allocation8], %s26
      %s28 = sshll.u32 [#allocation7], 4
      %s29 = int_to_ptr.vmem [resolvable:$true] %s28
      %34 = dma.hbm_to_vmem [thread:$0]  %s1, 16384, %s29, [#allocation8], 128, 128, 8
    $region9: #{tpu_custom_call.1} parent=1 // pred_fallthru
      _
    // Predicated region
    $region10: #{tpu_custom_call.1} parent=1 // pred_check
      _
    $region11: #{tpu_custom_call.1} parent=1 // pred_check_branch
      %36 = sbr.rel (0) target = $region13
    $region12: #{tpu_custom_call.1} parent=1 // pred_region
      %s38 = ssub.s32 128, 128
      %39 = vsyncadd [#allocation8], %s38
      %s40 = sshll.u32 [#allocation9], 4
      %s41 = int_to_ptr.vmem [resolvable:$true] %s40
      %46 = dma.hbm_to_vmem [thread:$0]  %s2, 128, %s41, [#allocation8], 32, 32, 2
    $region13: #{tpu_custom_call.1} parent=1 // pred_fallthru
      _
    // Predicated region
    $region14: #{tpu_custom_call.1} parent=1 // pred_check
      _
    $region15: #{tpu_custom_call.1} parent=1 // pred_check_branch
      %48 = sbr.rel (0) target = $region17
    $region16: #{tpu_custom_call.1} parent=1 // pred_region
      %49 = dma.done [#allocation5], 256
    $region17: #{tpu_custom_call.1} parent=1 // pred_fallthru
      _
    // Predicated region
    $region18: #{tpu_custom_call.1} parent=1 // pred_check
      _
    $region19: #{tpu_custom_call.1} parent=1 // pred_check_branch
      %51 = sbr.rel (0) target = $region21
    $region20: #{tpu_custom_call.1} parent=1 // pred_region
      %52 = dma.done [#allocation8], 16384
    $region21: #{tpu_custom_call.1} parent=1 // pred_fallthru
      _
    // Predicated region
    $region22: #{tpu_custom_call.1} parent=1 // pred_check
      _
    $region23: #{tpu_custom_call.1} parent=1 // pred_check_branch
      %54 = sbr.rel (0) target = $region25
    $region24: #{tpu_custom_call.1} parent=1 // pred_region
      %55 = dma.done [#allocation8], 128
    $region25: #{tpu_custom_call.1} parent=1 // pred_fallthru
      _
    %v56 = vld [vmem:[#allocation4] sm:$0xff]
    %v57 = vld [vmem:[#allocation4 + $0x8] sm:$0xff]
    %v58 = vld [vmem:[#allocation7] sm:$0xff]
    %v59 = vld [vmem:[#allocation7 + $0x8] sm:$0xff]
    %v60 = vld [vmem:[#allocation7 + $0x10] sm:$0xff]
    %v61 = vld [vmem:[#allocation7 + $0x18] sm:$0xff]
    %v62 = vld [vmem:[#allocation7 + $0x20] sm:$0xff]
    %v63 = vld [vmem:[#allocation7 + $0x28] sm:$0xff]
    %v64 = vld [vmem:[#allocation7 + $0x30] sm:$0xff]
    %v65 = vld [vmem:[#allocation7 + $0x38] sm:$0xff]
    %v66 = vld [vmem:[#allocation7 + $0x40] sm:$0xff]
    %v67 = vld [vmem:[#allocation7 + $0x48] sm:$0xff]
    %v68 = vld [vmem:[#allocation7 + $0x50] sm:$0xff]
    %v69 = vld [vmem:[#allocation7 + $0x58] sm:$0xff]
    %v70 = vld [vmem:[#allocation7 + $0x60] sm:$0xff]
    %v71 = vld [vmem:[#allocation7 + $0x68] sm:$0xff]
    %v72 = vld [vmem:[#allocation7 + $0x70] sm:$0xff]
    %v73 = vld [vmem:[#allocation7 + $0x78] sm:$0xff]
    %v74 = vld [vmem:[#allocation7 + $0x80] sm:$0xff]
    %v75 = vld [vmem:[#allocation7 + $0x88] sm:$0xff]
    %v76 = vld [vmem:[#allocation7 + $0x90] sm:$0xff]
    %v77 = vld [vmem:[#allocation7 + $0x98] sm:$0xff]
    %v78 = vld [vmem:[#allocation7 + $0xa0] sm:$0xff]
    %v79 = vld [vmem:[#allocation7 + $0xa8] sm:$0xff]
    %v80 = vld [vmem:[#allocation7 + $0xb0] sm:$0xff]
    %v81 = vld [vmem:[#allocation7 + $0xb8] sm:$0xff]
    %v82 = vld [vmem:[#allocation7 + $0xc0] sm:$0xff]
    %v83 = vld [vmem:[#allocation7 + $0xc8] sm:$0xff]
    %v84 = vld [vmem:[#allocation7 + $0xd0] sm:$0xff]
    %v85 = vld [vmem:[#allocation7 + $0xd8] sm:$0xff]
    %v86 = vld [vmem:[#allocation7 + $0xe0] sm:$0xff]
    %v87 = vld [vmem:[#allocation7 + $0xe8] sm:$0xff]
    %v88 = vld [vmem:[#allocation7 + $0xf0] sm:$0xff]
    %v89 = vld [vmem:[#allocation7 + $0xf8] sm:$0xff]
    %v90 = vld [vmem:[#allocation9] sm:$0x3]
    %v92 = vlaneseq
    %v93 = vshrl.u32 %v92, 7
    %v94 = vsub.s32 0, %v93
    %v95 = vrot.slane %v90, %v94
    %v96 = vlaneseq
    %v97 = vshrl.u32 %v96, 7
    %v98 = vsub.s32 1, %v97
    %v99 = vrot.slane %v90, %v98
    %v104 = vunpack.c.l.b16 %v56
    %v105 = vunpack.c.h.b16 %v56
    %v106 = vunpack.c.l.b16 %v57
    %v107 = vunpack.c.h.b16 %v57
    %v108 = vpack.c.b16 %v106, %v104
    %v109 = vpack.c.b16 %v107, %v105
    %v144 = vunpack.c.l.b16 %v58
    %v145 = vunpack.c.h.b16 %v58
    %v146 = vunpack.c.l.b16 %v59
    %v147 = vunpack.c.h.b16 %v59
    %v148 = vunpack.c.l.b16 %v60
    %v149 = vunpack.c.h.b16 %v60
    %v150 = vunpack.c.l.b16 %v61
    %v151 = vunpack.c.h.b16 %v61
    %v152 = vunpack.c.l.b16 %v62
    %v153 = vunpack.c.h.b16 %v62
    %v154 = vunpack.c.l.b16 %v63
    %v155 = vunpack.c.h.b16 %v63
    %v156 = vunpack.c.l.b16 %v64
    %v157 = vunpack.c.h.b16 %v64
    %v158 = vunpack.c.l.b16 %v65
    %v159 = vunpack.c.h.b16 %v65
    %v160 = vunpack.c.l.b16 %v66
    %v161 = vunpack.c.h.b16 %v66
    %v162 = vunpack.c.l.b16 %v67
    %v163 = vunpack.c.h.b16 %v67
    %v164 = vunpack.c.l.b16 %v68
    %v165 = vunpack.c.h.b16 %v68
    %v166 = vunpack.c.l.b16 %v69
    %v167 = vunpack.c.h.b16 %v69
    %v168 = vunpack.c.l.b16 %v70
    %v169 = vunpack.c.h.b16 %v70
    %v170 = vunpack.c.l.b16 %v71
    %v171 = vunpack.c.h.b16 %v71
    %v172 = vunpack.c.l.b16 %v72
    %v173 = vunpack.c.h.b16 %v72
    %v174 = vunpack.c.l.b16 %v73
    %v175 = vunpack.c.h.b16 %v73
    %v176 = vunpack.c.l.b16 %v74
    %v177 = vunpack.c.h.b16 %v74
    %v178 = vunpack.c.l.b16 %v75
    %v179 = vunpack.c.h.b16 %v75
    %v180 = vunpack.c.l.b16 %v76
    %v181 = vunpack.c.h.b16 %v76
    %v182 = vunpack.c.l.b16 %v77
    %v183 = vunpack.c.h.b16 %v77
    %v184 = vunpack.c.l.b16 %v78
    %v185 = vunpack.c.h.b16 %v78
    %v186 = vunpack.c.l.b16 %v79
    %v187 = vunpack.c.h.b16 %v79
    %v188 = vunpack.c.l.b16 %v80
    %v189 = vunpack.c.h.b16 %v80
    %v190 = vunpack.c.l.b16 %v81
    %v191 = vunpack.c.h.b16 %v81
    %v192 = vunpack.c.l.b16 %v82
    %v193 = vunpack.c.h.b16 %v82
    %v194 = vunpack.c.l.b16 %v83
    %v195 = vunpack.c.h.b16 %v83
    %v196 = vunpack.c.l.b16 %v84
    %v197 = vunpack.c.h.b16 %v84
    %v198 = vunpack.c.l.b16 %v85
    %v199 = vunpack.c.h.b16 %v85
    %v200 = vunpack.c.l.b16 %v86
    %v201 = vunpack.c.h.b16 %v86
    %v202 = vunpack.c.l.b16 %v87
    %v203 = vunpack.c.h.b16 %v87
    %v204 = vunpack.c.l.b16 %v88
    %v205 = vunpack.c.h.b16 %v88
    %v206 = vunpack.c.l.b16 %v89
    %v207 = vunpack.c.h.b16 %v89
    %v208 = vpack.c.b16 %v146, %v144
    %v209 = vpack.c.b16 %v147, %v145
    %v210 = vpack.c.b16 %v150, %v148
    %v211 = vpack.c.b16 %v151, %v149
    %v212 = vpack.c.b16 %v154, %v152
    %v213 = vpack.c.b16 %v155, %v153
    %v214 = vpack.c.b16 %v158, %v156
    %v215 = vpack.c.b16 %v159, %v157
    %v216 = vpack.c.b16 %v162, %v160
    %v217 = vpack.c.b16 %v163, %v161
    %v218 = vpack.c.b16 %v166, %v164
    %v219 = vpack.c.b16 %v167, %v165
    %v220 = vpack.c.b16 %v170, %v168
    %v221 = vpack.c.b16 %v171, %v169
    %v222 = vpack.c.b16 %v174, %v172
    %v223 = vpack.c.b16 %v175, %v173
    %v224 = vpack.c.b16 %v178, %v176
    %v225 = vpack.c.b16 %v179, %v177
    %v226 = vpack.c.b16 %v182, %v180
    %v227 = vpack.c.b16 %v183, %v181
    %v228 = vpack.c.b16 %v186, %v184
    %v229 = vpack.c.b16 %v187, %v185
    %v230 = vpack.c.b16 %v190, %v188
    %v231 = vpack.c.b16 %v191, %v189
    %v232 = vpack.c.b16 %v194, %v192
    %v233 = vpack.c.b16 %v195, %v193
    %v234 = vpack.c.b16 %v198, %v196
    %v235 = vpack.c.b16 %v199, %v197
    %v236 = vpack.c.b16 %v202, %v200
    %v237 = vpack.c.b16 %v203, %v201
    %v238 = vpack.c.b16 %v206, %v204
    %v239 = vpack.c.b16 %v207, %v205
    %272 = vmatprep.subr.bf16.mxu0 %v223
    %273 = vmatpush1.bf16.msra.mxu0 %v222
    %274 = vmatprep.subr.bf16.mxu0 %v221
    %275 = vmatpush1.bf16.msra.mxu0 %v220
    %276 = vmatprep.subr.bf16.mxu0 %v219
    %277 = vmatpush1.bf16.msra.mxu0 %v218
    %278 = vmatprep.subr.bf16.mxu0 %v217
    %279 = vmatpush1.bf16.msra.mxu0 %v216
    %280 = vmatprep.subr.bf16.mxu0 %v215
    %281 = vmatpush1.bf16.msra.mxu0 %v214
    %282 = vmatprep.subr.bf16.mxu0 %v213
    %283 = vmatpush1.bf16.msra.mxu0 %v212
    %284 = vmatprep.subr.bf16.mxu0 %v211
    %285 = vmatpush1.bf16.msra.mxu0 %v210
    %286 = vmatprep.subr.bf16.mxu0 %v209
    %287 = vmatpush1.bf16.msra.mxu0 %v208
    %288 = vmatprep.subr.bf16.mxu0 %v239
    %289 = vmatpush2.bf16.msra.mxu0 %v238
    %290 = vmatprep.subr.bf16.mxu0 %v237
    %291 = vmatpush2.bf16.msra.mxu0 %v236
    %292 = vmatprep.subr.bf16.mxu0 %v235
    %293 = vmatpush2.bf16.msra.mxu0 %v234
    %294 = vmatprep.subr.bf16.mxu0 %v233
    %295 = vmatpush2.bf16.msra.mxu0 %v232
    %296 = vmatprep.subr.bf16.mxu0 %v231
    %297 = vmatpush2.bf16.msra.mxu0 %v230
    %298 = vmatprep.subr.bf16.mxu0 %v229
    %299 = vmatpush2.bf16.msra.mxu0 %v228
    %300 = vmatprep.subr.bf16.mxu0 %v227
    %301 = vmatpush2.bf16.msra.mxu0 %v226
    %302 = vmatprep.subr.bf16.mxu0 %v225
    %303 = vmatpush2.bf16.msra.mxu0 %v224
    %304 = vmatprep.mubr.bf16.mxu0 %v109
    %305 = vmatmul.mubr.bf16.gmra.mxu0 %v108
    %v306 = vpop.f32.mrf.mxu0
    %v307 = vadd.f32 %v95, %v306
    %v308 = vpop.f32.mrf.mxu0
    %v309 = vadd.f32 %v99, %v308
    %v310 = vpop.f32.mrf.mxu0
    %v311 = vadd.f32 %v95, %v310
    %v312 = vpop.f32.mrf.mxu0
    %v313 = vadd.f32 %v99, %v312
    %314 = vdwg.mxu0
    %v315 = vpack.c.bf16 %v311, %v307
    %v316 = vpack.c.bf16 %v313, %v309
    %v319 = vunpack.c.l.b16 %v315
    %v320 = vunpack.c.l.b16 %v316
    %v321 = vunpack.c.h.b16 %v315
    %v322 = vunpack.c.h.b16 %v316
    %v323 = vpack.c.b16 %v320, %v319
    %v324 = vpack.c.b16 %v322, %v321
    %327 = vst [vmem:[#allocation2] sm:$0xff] %v323
    %328 = vst [vmem:[#allocation2 + $0x8] sm:$0xff] %v324
    %v329 = vld [vmem:[#allocation2] sm:$0xff]
    %v330 = vld [vmem:[#allocation2 + $0x8] sm:$0xff]
    %s331 = scalar_lea.vmem [#allocation7], 256
    %v332 = vld [vmem:[%s331] sm:$0xff]
    %v333 = vld [vmem:[%s331 + $0x8] sm:$0xff]
    %v334 = vld [vmem:[%s331 + $0x10] sm:$0xff]
    %v335 = vld [vmem:[%s331 + $0x18] sm:$0xff]
    %v336 = vld [vmem:[%s331 + $0x20] sm:$0xff]
    %v337 = vld [vmem:[%s331 + $0x28] sm:$0xff]
    %v338 = vld [vmem:[%s331 + $0x30] sm:$0xff]
    %v339 = vld [vmem:[%s331 + $0x38] sm:$0xff]
    %v340 = vld [vmem:[%s331 + $0x40] sm:$0xff]
    %v341 = vld [vmem:[%s331 + $0x48] sm:$0xff]
    %v342 = vld [vmem:[%s331 + $0x50] sm:$0xff]
    %v343 = vld [vmem:[%s331 + $0x58] sm:$0xff]
    %v344 = vld [vmem:[%s331 + $0x60] sm:$0xff]
    %v345 = vld [vmem:[%s331 + $0x68] sm:$0xff]
    %v346 = vld [vmem:[%s331 + $0x70] sm:$0xff]
    %v347 = vld [vmem:[%s331 + $0x78] sm:$0xff]
    %v348 = vld [vmem:[%s331 + $0x80] sm:$0xff]
    %v349 = vld [vmem:[%s331 + $0x88] sm:$0xff]
    %v350 = vld [vmem:[%s331 + $0x90] sm:$0xff]
    %v351 = vld [vmem:[%s331 + $0x98] sm:$0xff]
    %v352 = vld [vmem:[%s331 + $0xa0] sm:$0xff]
    %v353 = vld [vmem:[%s331 + $0xa8] sm:$0xff]
    %v354 = vld [vmem:[%s331 + $0xb0] sm:$0xff]
    %v355 = vld [vmem:[%s331 + $0xb8] sm:$0xff]
    %v356 = vld [vmem:[%s331 + $0xc0] sm:$0xff]
    %v357 = vld [vmem:[%s331 + $0xc8] sm:$0xff]
    %v358 = vld [vmem:[%s331 + $0xd0] sm:$0xff]
    %v359 = vld [vmem:[%s331 + $0xd8] sm:$0xff]
    %v360 = vld [vmem:[%s331 + $0xe0] sm:$0xff]
    %v361 = vld [vmem:[%s331 + $0xe8] sm:$0xff]
    %v362 = vld [vmem:[%s331 + $0xf0] sm:$0xff]
    %v363 = vld [vmem:[%s331 + $0xf8] sm:$0xff]
    %s364 = scalar_lea.vmem [#allocation9], 2
    %v365 = vld [vmem:[%s364] sm:$0x3]
    %v367 = vlaneseq
    %v368 = vshrl.u32 %v367, 7
    %v369 = vsub.s32 0, %v368
    %v370 = vrot.slane %v365, %v369
    %v371 = vlaneseq
    %v372 = vshrl.u32 %v371, 7
    %v373 = vsub.s32 1, %v372
    %v374 = vrot.slane %v365, %v373
    %v379 = vunpack.c.l.b16 %v329
    %v380 = vunpack.c.h.b16 %v329
    %v381 = vunpack.c.l.b16 %v330
    %v382 = vunpack.c.h.b16 %v330
    %v383 = vpack.c.b16 %v381, %v379
    %v384 = vpack.c.b16 %v382, %v380
    %v419 = vunpack.c.l.b16 %v332
    %v420 = vunpack.c.h.b16 %v332
    %v421 = vunpack.c.l.b16 %v333
    %v422 = vunpack.c.h.b16 %v333
    %v423 = vunpack.c.l.b16 %v334
    %v424 = vunpack.c.h.b16 %v334
    %v425 = vunpack.c.l.b16 %v335
    %v426 = vunpack.c.h.b16 %v335
    %v427 = vunpack.c.l.b16 %v336
    %v428 = vunpack.c.h.b16 %v336
    %v429 = vunpack.c.l.b16 %v337
    %v430 = vunpack.c.h.b16 %v337
    %v431 = vunpack.c.l.b16 %v338
    %v432 = vunpack.c.h.b16 %v338
    %v433 = vunpack.c.l.b16 %v339
    %v434 = vunpack.c.h.b16 %v339
    %v435 = vunpack.c.l.b16 %v340
    %v436 = vunpack.c.h.b16 %v340
    %v437 = vunpack.c.l.b16 %v341
    %v438 = vunpack.c.h.b16 %v341
    %v439 = vunpack.c.l.b16 %v342
    %v440 = vunpack.c.h.b16 %v342
    %v441 = vunpack.c.l.b16 %v343
    %v442 = vunpack.c.h.b16 %v343
    %v443 = vunpack.c.l.b16 %v344
    %v444 = vunpack.c.h.b16 %v344
    %v445 = vunpack.c.l.b16 %v345
    %v446 = vunpack.c.h.b16 %v345
    %v447 = vunpack.c.l.b16 %v346
    %v448 = vunpack.c.h.b16 %v346
    %v449 = vunpack.c.l.b16 %v347
    %v450 = vunpack.c.h.b16 %v347
    %v451 = vunpack.c.l.b16 %v348
    %v452 = vunpack.c.h.b16 %v348
    %v453 = vunpack.c.l.b16 %v349
    %v454 = vunpack.c.h.b16 %v349
    %v455 = vunpack.c.l.b16 %v350
    %v456 = vunpack.c.h.b16 %v350
    %v457 = vunpack.c.l.b16 %v351
    %v458 = vunpack.c.h.b16 %v351
    %v459 = vunpack.c.l.b16 %v352
    %v460 = vunpack.c.h.b16 %v352
    %v461 = vunpack.c.l.b16 %v353
    %v462 = vunpack.c.h.b16 %v353
    %v463 = vunpack.c.l.b16 %v354
    %v464 = vunpack.c.h.b16 %v354
    %v465 = vunpack.c.l.b16 %v355
    %v466 = vunpack.c.h.b16 %v355
    %v467 = vunpack.c.l.b16 %v356
    %v468 = vunpack.c.h.b16 %v356
    %v469 = vunpack.c.l.b16 %v357
    %v470 = vunpack.c.h.b16 %v357
    %v471 = vunpack.c.l.b16 %v358
    %v472 = vunpack.c.h.b16 %v358
    %v473 = vunpack.c.l.b16 %v359
    %v474 = vunpack.c.h.b16 %v359
    %v475 = vunpack.c.l.b16 %v360
    %v476 = vunpack.c.h.b16 %v360
    %v477 = vunpack.c.l.b16 %v361
    %v478 = vunpack.c.h.b16 %v361
    %v479 = vunpack.c.l.b16 %v362
    %v480 = vunpack.c.h.b16 %v362
    %v481 = vunpack.c.l.b16 %v363
    %v482 = vunpack.c.h.b16 %v363
    %v483 = vpack.c.b16 %v421, %v419
    %v484 = vpack.c.b16 %v422, %v420
    %v485 = vpack.c.b16 %v425, %v423
    %v486 = vpack.c.b16 %v426, %v424
    %v487 = vpack.c.b16 %v429, %v427
    %v488 = vpack.c.b16 %v430, %v428
    %v489 = vpack.c.b16 %v433, %v431
    %v490 = vpack.c.b16 %v434, %v432
    %v491 = vpack.c.b16 %v437, %v435
    %v492 = vpack.c.b16 %v438, %v436
    %v493 = vpack.c.b16 %v441, %v439
    %v494 = vpack.c.b16 %v442, %v440
    %v495 = vpack.c.b16 %v445, %v443
    %v496 = vpack.c.b16 %v446, %v444
    %v497 = vpack.c.b16 %v449, %v447
    %v498 = vpack.c.b16 %v450, %v448
    %v499 = vpack.c.b16 %v453, %v451
    %v500 = vpack.c.b16 %v454, %v452
    %v501 = vpack.c.b16 %v457, %v455
    %v502 = vpack.c.b16 %v458, %v456
    %v503 = vpack.c.b16 %v461, %v459
    %v504 = vpack.c.b16 %v462, %v460
    %v505 = vpack.c.b16 %v465, %v463
    %v506 = vpack.c.b16 %v466, %v464
    %v507 = vpack.c.b16 %v469, %v467
    %v508 = vpack.c.b16 %v470, %v468
    %v509 = vpack.c.b16 %v473, %v471
    %v510 = vpack.c.b16 %v474, %v472
    %v511 = vpack.c.b16 %v477, %v475
    %v512 = vpack.c.b16 %v478, %v476
    %v513 = vpack.c.b16 %v481, %v479
    %v514 = vpack.c.b16 %v482, %v480
    %547 = vmatprep.subr.bf16.mxu0 %v498
    %548 = vmatpush1.bf16.msra.mxu0 %v497
    %549 = vmatprep.subr.bf16.mxu0 %v496
    %550 = vmatpush1.bf16.msra.mxu0 %v495
    %551 = vmatprep.subr.bf16.mxu0 %v494
    %552 = vmatpush1.bf16.msra.mxu0 %v493
    %553 = vmatprep.subr.bf16.mxu0 %v492
    %554 = vmatpush1.bf16.msra.mxu0 %v491
    %555 = vmatprep.subr.bf16.mxu0 %v490
    %556 = vmatpush1.bf16.msra.mxu0 %v489
    %557 = vmatprep.subr.bf16.mxu0 %v488
    %558 = vmatpush1.bf16.msra.mxu0 %v487
    %559 = vmatprep.subr.bf16.mxu0 %v486
    %560 = vmatpush1.bf16.msra.mxu0 %v485
    %561 = vmatprep.subr.bf16.mxu0 %v484
    %562 = vmatpush1.bf16.msra.mxu0 %v483
    %563 = vmatprep.subr.bf16.mxu0 %v514
    %564 = vmatpush2.bf16.msra.mxu0 %v513
    %565 = vmatprep.subr.bf16.mxu0 %v512
    %566 = vmatpush2.bf16.msra.mxu0 %v511
    %567 = vmatprep.subr.bf16.mxu0 %v510
    %568 = vmatpush2.bf16.msra.mxu0 %v509
    %569 = vmatprep.subr.bf16.mxu0 %v508
    %570 = vmatpush2.bf16.msra.mxu0 %v507
    %571 = vmatprep.subr.bf16.mxu0 %v506
    %572 = vmatpush2.bf16.msra.mxu0 %v505
    %573 = vmatprep.subr.bf16.mxu0 %v504
    %574 = vmatpush2.bf16.msra.mxu0 %v503
    %575 = vmatprep.subr.bf16.mxu0 %v502
    %576 = vmatpush2.bf16.msra.mxu0 %v501
    %577 = vmatprep.subr.bf16.mxu0 %v500
    %578 = vmatpush2.bf16.msra.mxu0 %v499
    %579 = vmatprep.mubr.bf16.mxu0 %v384
    %580 = vmatmul.mubr.bf16.gmra.mxu0 %v383
    %v581 = vpop.f32.mrf.mxu0
    %v582 = vadd.f32 %v370, %v581
    %v583 = vpop.f32.mrf.mxu0
    %v584 = vadd.f32 %v374, %v583
    %v585 = vpop.f32.mrf.mxu0
    %v586 = vadd.f32 %v370, %v585
    %v587 = vpop.f32.mrf.mxu0
    %v588 = vadd.f32 %v374, %v587
    %589 = vdwg.mxu0
    %v590 = vpack.c.bf16 %v586, %v582
    %v591 = vpack.c.bf16 %v588, %v584
    %v594 = vunpack.c.l.b16 %v590
    %v595 = vunpack.c.l.b16 %v591
    %v596 = vunpack.c.h.b16 %v590
    %v597 = vunpack.c.h.b16 %v591
    %v598 = vpack.c.b16 %v595, %v594
    %v599 = vpack.c.b16 %v597, %v596
    %602 = vst [vmem:[#allocation3] sm:$0xff] %v598
    %603 = vst [vmem:[#allocation3 + $0x8] sm:$0xff] %v599
    %v604 = vld [vmem:[#allocation3] sm:$0xff]
    %v605 = vld [vmem:[#allocation3 + $0x8] sm:$0xff]
    %s606 = scalar_lea.vmem [#allocation7], 512
    %v607 = vld [vmem:[%s606] sm:$0xff]
    %v608 = vld [vmem:[%s606 + $0x8] sm:$0xff]
    %v609 = vld [vmem:[%s606 + $0x10] sm:$0xff]
    %v610 = vld [vmem:[%s606 + $0x18] sm:$0xff]
    %v611 = vld [vmem:[%s606 + $0x20] sm:$0xff]
    %v612 = vld [vmem:[%s606 + $0x28] sm:$0xff]
    %v613 = vld [vmem:[%s606 + $0x30] sm:$0xff]
    %v614 = vld [vmem:[%s606 + $0x38] sm:$0xff]
    %v615 = vld [vmem:[%s606 + $0x40] sm:$0xff]
    %v616 = vld [vmem:[%s606 + $0x48] sm:$0xff]
    %v617 = vld [vmem:[%s606 + $0x50] sm:$0xff]
    %v618 = vld [vmem:[%s606 + $0x58] sm:$0xff]
    %v619 = vld [vmem:[%s606 + $0x60] sm:$0xff]
    %v620 = vld [vmem:[%s606 + $0x68] sm:$0xff]
    %v621 = vld [vmem:[%s606 + $0x70] sm:$0xff]
    %v622 = vld [vmem:[%s606 + $0x78] sm:$0xff]
    %v623 = vld [vmem:[%s606 + $0x80] sm:$0xff]
    %v624 = vld [vmem:[%s606 + $0x88] sm:$0xff]
    %v625 = vld [vmem:[%s606 + $0x90] sm:$0xff]
    %v626 = vld [vmem:[%s606 + $0x98] sm:$0xff]
    %v627 = vld [vmem:[%s606 + $0xa0] sm:$0xff]
    %v628 = vld [vmem:[%s606 + $0xa8] sm:$0xff]
    %v629 = vld [vmem:[%s606 + $0xb0] sm:$0xff]
    %v630 = vld [vmem:[%s606 + $0xb8] sm:$0xff]
    %v631 = vld [vmem:[%s606 + $0xc0] sm:$0xff]
    %v632 = vld [vmem:[%s606 + $0xc8] sm:$0xff]
    %v633 = vld [vmem:[%s606 + $0xd0] sm:$0xff]
    %v634 = vld [vmem:[%s606 + $0xd8] sm:$0xff]
    %v635 = vld [vmem:[%s606 + $0xe0] sm:$0xff]
    %v636 = vld [vmem:[%s606 + $0xe8] sm:$0xff]
    %v637 = vld [vmem:[%s606 + $0xf0] sm:$0xff]
    %v638 = vld [vmem:[%s606 + $0xf8] sm:$0xff]
    %s639 = scalar_lea.vmem [#allocation9], 4
    %v640 = vld [vmem:[%s639] sm:$0x3]
    %v642 = vlaneseq
    %v643 = vshrl.u32 %v642, 7
    %v644 = vsub.s32 0, %v643
    %v645 = vrot.slane %v640, %v644
    %v646 = vlaneseq
    %v647 = vshrl.u32 %v646, 7
    %v648 = vsub.s32 1, %v647
    %v649 = vrot.slane %v640, %v648
    %v654 = vunpack.c.l.b16 %v604
    %v655 = vunpack.c.h.b16 %v604
    %v656 = vunpack.c.l.b16 %v605
    %v657 = vunpack.c.h.b16 %v605
    %v658 = vpack.c.b16 %v656, %v654
    %v659 = vpack.c.b16 %v657, %v655
    %v694 = vunpack.c.l.b16 %v607
    %v695 = vunpack.c.h.b16 %v607
    %v696 = vunpack.c.l.b16 %v608
    %v697 = vunpack.c.h.b16 %v608
    %v698 = vunpack.c.l.b16 %v609
    %v699 = vunpack.c.h.b16 %v609
    %v700 = vunpack.c.l.b16 %v610
    %v701 = vunpack.c.h.b16 %v610
    %v702 = vunpack.c.l.b16 %v611
    %v703 = vunpack.c.h.b16 %v611
    %v704 = vunpack.c.l.b16 %v612
    %v705 = vunpack.c.h.b16 %v612
    %v706 = vunpack.c.l.b16 %v613
    %v707 = vunpack.c.h.b16 %v613
    %v708 = vunpack.c.l.b16 %v614
    %v709 = vunpack.c.h.b16 %v614
    %v710 = vunpack.c.l.b16 %v615
    %v711 = vunpack.c.h.b16 %v615
    %v712 = vunpack.c.l.b16 %v616
    %v713 = vunpack.c.h.b16 %v616
    %v714 = vunpack.c.l.b16 %v617
    %v715 = vunpack.c.h.b16 %v617
    %v716 = vunpack.c.l.b16 %v618
    %v717 = vunpack.c.h.b16 %v618
    %v718 = vunpack.c.l.b16 %v619
    %v719 = vunpack.c.h.b16 %v619
    %v720 = vunpack.c.l.b16 %v620
    %v721 = vunpack.c.h.b16 %v620
    %v722 = vunpack.c.l.b16 %v621
    %v723 = vunpack.c.h.b16 %v621
    %v724 = vunpack.c.l.b16 %v622
    %v725 = vunpack.c.h.b16 %v622
    %v726 = vunpack.c.l.b16 %v623
    %v727 = vunpack.c.h.b16 %v623
    %v728 = vunpack.c.l.b16 %v624
    %v729 = vunpack.c.h.b16 %v624
    %v730 = vunpack.c.l.b16 %v625
    %v731 = vunpack.c.h.b16 %v625
    %v732 = vunpack.c.l.b16 %v626
    %v733 = vunpack.c.h.b16 %v626
    %v734 = vunpack.c.l.b16 %v627
    %v735 = vunpack.c.h.b16 %v627
    %v736 = vunpack.c.l.b16 %v628
    %v737 = vunpack.c.h.b16 %v628
    %v738 = vunpack.c.l.b16 %v629
    %v739 = vunpack.c.h.b16 %v629
    %v740 = vunpack.c.l.b16 %v630
    %v741 = vunpack.c.h.b16 %v630
    %v742 = vunpack.c.l.b16 %v631
    %v743 = vunpack.c.h.b16 %v631
    %v744 = vunpack.c.l.b16 %v632
    %v745 = vunpack.c.h.b16 %v632
    %v746 = vunpack.c.l.b16 %v633
    %v747 = vunpack.c.h.b16 %v633
    %v748 = vunpack.c.l.b16 %v634
    %v749 = vunpack.c.h.b16 %v634
    %v750 = vunpack.c.l.b16 %v635
    %v751 = vunpack.c.h.b16 %v635
    %v752 = vunpack.c.l.b16 %v636
    %v753 = vunpack.c.h.b16 %v636
    %v754 = vunpack.c.l.b16 %v637
    %v755 = vunpack.c.h.b16 %v637
    %v756 = vunpack.c.l.b16 %v638
    %v757 = vunpack.c.h.b16 %v638
    %v758 = vpack.c.b16 %v696, %v694
    %v759 = vpack.c.b16 %v697, %v695
    %v760 = vpack.c.b16 %v700, %v698
    %v761 = vpack.c.b16 %v701, %v699
    %v762 = vpack.c.b16 %v704, %v702
    %v763 = vpack.c.b16 %v705, %v703
    %v764 = vpack.c.b16 %v708, %v706
    %v765 = vpack.c.b16 %v709, %v707
    %v766 = vpack.c.b16 %v712, %v710
    %v767 = vpack.c.b16 %v713, %v711
    %v768 = vpack.c.b16 %v716, %v714
    %v769 = vpack.c.b16 %v717, %v715
    %v770 = vpack.c.b16 %v720, %v718
    %v771 = vpack.c.b16 %v721, %v719
    %v772 = vpack.c.b16 %v724, %v722
    %v773 = vpack.c.b16 %v725, %v723
    %v774 = vpack.c.b16 %v728, %v726
    %v775 = vpack.c.b16 %v729, %v727
    %v776 = vpack.c.b16 %v732, %v730
    %v777 = vpack.c.b16 %v733, %v731
    %v778 = vpack.c.b16 %v736, %v734
    %v779 = vpack.c.b16 %v737, %v735
    %v780 = vpack.c.b16 %v740, %v738
    %v781 = vpack.c.b16 %v741, %v739
    %v782 = vpack.c.b16 %v744, %v742
    %v783 = vpack.c.b16 %v745, %v743
    %v784 = vpack.c.b16 %v748, %v746
    %v785 = vpack.c.b16 %v749, %v747
    %v786 = vpack.c.b16 %v752, %v750
    %v787 = vpack.c.b16 %v753, %v751
    %v788 = vpack.c.b16 %v756, %v754
    %v789 = vpack.c.b16 %v757, %v755
    %822 = vmatprep.subr.bf16.mxu0 %v773
    %823 = vmatpush1.bf16.msra.mxu0 %v772
    %824 = vmatprep.subr.bf16.mxu0 %v771
    %825 = vmatpush1.bf16.msra.mxu0 %v770
    %826 = vmatprep.subr.bf16.mxu0 %v769
    %827 = vmatpush1.bf16.msra.mxu0 %v768
    %828 = vmatprep.subr.bf16.mxu0 %v767
    %829 = vmatpush1.bf16.msra.mxu0 %v766
    %830 = vmatprep.subr.bf16.mxu0 %v765
    %831 = vmatpush1.bf16.msra.mxu0 %v764
    %832 = vmatprep.subr.bf16.mxu0 %v763
    %833 = vmatpush1.bf16.msra.mxu0 %v762
    %834 = vmatprep.subr.bf16.mxu0 %v761
    %835 = vmatpush1.bf16.msra.mxu0 %v760
    %836 = vmatprep.subr.bf16.mxu0 %v759
    %837 = vmatpush1.bf16.msra.mxu0 %v758
    %838 = vmatprep.subr.bf16.mxu0 %v789
    %839 = vmatpush2.bf16.msra.mxu0 %v788
    %840 = vmatprep.subr.bf16.mxu0 %v787
    %841 = vmatpush2.bf16.msra.mxu0 %v786
    %842 = vmatprep.subr.bf16.mxu0 %v785
    %843 = vmatpush2.bf16.msra.mxu0 %v784
    %844 = vmatprep.subr.bf16.mxu0 %v783
    %845 = vmatpush2.bf16.msra.mxu0 %v782
    %846 = vmatprep.subr.bf16.mxu0 %v781
    %847 = vmatpush2.bf16.msra.mxu0 %v780
    %848 = vmatprep.subr.bf16.mxu0 %v779
    %849 = vmatpush2.bf16.msra.mxu0 %v778
    %850 = vmatprep.subr.bf16.mxu0 %v777
    %851 = vmatpush2.bf16.msra.mxu0 %v776
    %852 = vmatprep.subr.bf16.mxu0 %v775
    %853 = vmatpush2.bf16.msra.mxu0 %v774
    %854 = vmatprep.mubr.bf16.mxu0 %v659
    %855 = vmatmul.mubr.bf16.gmra.mxu0 %v658
    %v856 = vpop.f32.mrf.mxu0
    %v857 = vadd.f32 %v645, %v856
    %v858 = vpop.f32.mrf.mxu0
    %v859 = vadd.f32 %v649, %v858
    %v860 = vpop.f32.mrf.mxu0
    %v861 = vadd.f32 %v645, %v860
    %v862 = vpop.f32.mrf.mxu0
    %v863 = vadd.f32 %v649, %v862
    %864 = vdwg.mxu0
    %v865 = vpack.c.bf16 %v861, %v857
    %v866 = vpack.c.bf16 %v863, %v859
    %v869 = vunpack.c.l.b16 %v865
    %v870 = vunpack.c.l.b16 %v866
    %v871 = vunpack.c.h.b16 %v865
    %v872 = vunpack.c.h.b16 %v866
    %v873 = vpack.c.b16 %v870, %v869
    %v874 = vpack.c.b16 %v872, %v871
    %877 = vst [vmem:[#allocation2] sm:$0xff] %v873
    %878 = vst [vmem:[#allocation2 + $0x8] sm:$0xff] %v874
    %v879 = vld [vmem:[#allocation2] sm:$0xff]
    %v880 = vld [vmem:[#allocation2 + $0x8] sm:$0xff]
    %s881 = scalar_lea.vmem [#allocation7], 768
    %v882 = vld [vmem:[%s881] sm:$0xff]
    %v883 = vld [vmem:[%s881 + $0x8] sm:$0xff]
    %v884 = vld [vmem:[%s881 + $0x10] sm:$0xff]
    %v885 = vld [vmem:[%s881 + $0x18] sm:$0xff]
    %v886 = vld [vmem:[%s881 + $0x20] sm:$0xff]
    %v887 = vld [vmem:[%s881 + $0x28] sm:$0xff]
    %v888 = vld [vmem:[%s881 + $0x30] sm:$0xff]
    %v889 = vld [vmem:[%s881 + $0x38] sm:$0xff]
    %v890 = vld [vmem:[%s881 + $0x40] sm:$0xff]
    %v891 = vld [vmem:[%s881 + $0x48] sm:$0xff]
    %v892 = vld [vmem:[%s881 + $0x50] sm:$0xff]
    %v893 = vld [vmem:[%s881 + $0x58] sm:$0xff]
    %v894 = vld [vmem:[%s881 + $0x60] sm:$0xff]
    %v895 = vld [vmem:[%s881 + $0x68] sm:$0xff]
    %v896 = vld [vmem:[%s881 + $0x70] sm:$0xff]
    %v897 = vld [vmem:[%s881 + $0x78] sm:$0xff]
    %v898 = vld [vmem:[%s881 + $0x80] sm:$0xff]
    %v899 = vld [vmem:[%s881 + $0x88] sm:$0xff]
    %v900 = vld [vmem:[%s881 + $0x90] sm:$0xff]
    %v901 = vld [vmem:[%s881 + $0x98] sm:$0xff]
    %v902 = vld [vmem:[%s881 + $0xa0] sm:$0xff]
    %v903 = vld [vmem:[%s881 + $0xa8] sm:$0xff]
    %v904 = vld [vmem:[%s881 + $0xb0] sm:$0xff]
    %v905 = vld [vmem:[%s881 + $0xb8] sm:$0xff]
    %v906 = vld [vmem:[%s881 + $0xc0] sm:$0xff]
    %v907 = vld [vmem:[%s881 + $0xc8] sm:$0xff]
    %v908 = vld [vmem:[%s881 + $0xd0] sm:$0xff]
    %v909 = vld [vmem:[%s881 + $0xd8] sm:$0xff]
    %v910 = vld [vmem:[%s881 + $0xe0] sm:$0xff]
    %v911 = vld [vmem:[%s881 + $0xe8] sm:$0xff]
    %v912 = vld [vmem:[%s881 + $0xf0] sm:$0xff]
    %v913 = vld [vmem:[%s881 + $0xf8] sm:$0xff]
    %s914 = scalar_lea.vmem [#allocation9], 6
    %v915 = vld [vmem:[%s914] sm:$0x3]
    %v917 = vlaneseq
    %v918 = vshrl.u32 %v917, 7
    %v919 = vsub.s32 0, %v918
    %v920 = vrot.slane %v915, %v919
    %v921 = vlaneseq
    %v922 = vshrl.u32 %v921, 7
    %v923 = vsub.s32 1, %v922
    %v924 = vrot.slane %v915, %v923
    %v929 = vunpack.c.l.b16 %v879
    %v930 = vunpack.c.h.b16 %v879
    %v931 = vunpack.c.l.b16 %v880
    %v932 = vunpack.c.h.b16 %v880
    %v933 = vpack.c.b16 %v931, %v929
    %v934 = vpack.c.b16 %v932, %v930
    %v969 = vunpack.c.l.b16 %v882
    %v970 = vunpack.c.h.b16 %v882
    %v971 = vunpack.c.l.b16 %v883
    %v972 = vunpack.c.h.b16 %v883
    %v973 = vunpack.c.l.b16 %v884
    %v974 = vunpack.c.h.b16 %v884
    %v975 = vunpack.c.l.b16 %v885
    %v976 = vunpack.c.h.b16 %v885
    %v977 = vunpack.c.l.b16 %v886
    %v978 = vunpack.c.h.b16 %v886
    %v979 = vunpack.c.l.b16 %v887
    %v980 = vunpack.c.h.b16 %v887
    %v981 = vunpack.c.l.b16 %v888
    %v982 = vunpack.c.h.b16 %v888
    %v983 = vunpack.c.l.b16 %v889
    %v984 = vunpack.c.h.b16 %v889
    %v985 = vunpack.c.l.b16 %v890
    %v986 = vunpack.c.h.b16 %v890
    %v987 = vunpack.c.l.b16 %v891
    %v988 = vunpack.c.h.b16 %v891
    %v989 = vunpack.c.l.b16 %v892
    %v990 = vunpack.c.h.b16 %v892
    %v991 = vunpack.c.l.b16 %v893
    %v992 = vunpack.c.h.b16 %v893
    %v993 = vunpack.c.l.b16 %v894
    %v994 = vunpack.c.h.b16 %v894
    %v995 = vunpack.c.l.b16 %v895
    %v996 = vunpack.c.h.b16 %v895
    %v997 = vunpack.c.l.b16 %v896
    %v998 = vunpack.c.h.b16 %v896
    %v999 = vunpack.c.l.b16 %v897
    %v1000 = vunpack.c.h.b16 %v897
    %v1001 = vunpack.c.l.b16 %v898
    %v1002 = vunpack.c.h.b16 %v898
    %v1003 = vunpack.c.l.b16 %v899
    %v1004 = vunpack.c.h.b16 %v899
    %v1005 = vunpack.c.l.b16 %v900
    %v1006 = vunpack.c.h.b16 %v900
    %v1007 = vunpack.c.l.b16 %v901
    %v1008 = vunpack.c.h.b16 %v901
    %v1009 = vunpack.c.l.b16 %v902
    %v1010 = vunpack.c.h.b16 %v902
    %v1011 = vunpack.c.l.b16 %v903
    %v1012 = vunpack.c.h.b16 %v903
    %v1013 = vunpack.c.l.b16 %v904
    %v1014 = vunpack.c.h.b16 %v904
    %v1015 = vunpack.c.l.b16 %v905
    %v1016 = vunpack.c.h.b16 %v905
    %v1017 = vunpack.c.l.b16 %v906
    %v1018 = vunpack.c.h.b16 %v906
    %v1019 = vunpack.c.l.b16 %v907
    %v1020 = vunpack.c.h.b16 %v907
    %v1021 = vunpack.c.l.b16 %v908
    %v1022 = vunpack.c.h.b16 %v908
    %v1023 = vunpack.c.l.b16 %v909
    %v1024 = vunpack.c.h.b16 %v909
    %v1025 = vunpack.c.l.b16 %v910
    %v1026 = vunpack.c.h.b16 %v910
    %v1027 = vunpack.c.l.b16 %v911
    %v1028 = vunpack.c.h.b16 %v911
    %v1029 = vunpack.c.l.b16 %v912
    %v1030 = vunpack.c.h.b16 %v912
    %v1031 = vunpack.c.l.b16 %v913
    %v1032 = vunpack.c.h.b16 %v913
    %v1033 = vpack.c.b16 %v971, %v969
    %v1034 = vpack.c.b16 %v972, %v970
    %v1035 = vpack.c.b16 %v975, %v973
    %v1036 = vpack.c.b16 %v976, %v974
    %v1037 = vpack.c.b16 %v979, %v977
    %v1038 = vpack.c.b16 %v980, %v978
    %v1039 = vpack.c.b16 %v983, %v981
    %v1040 = vpack.c.b16 %v984, %v982
    %v1041 = vpack.c.b16 %v987, %v985
    %v1042 = vpack.c.b16 %v988, %v986
    %v1043 = vpack.c.b16 %v991, %v989
    %v1044 = vpack.c.b16 %v992, %v990
    %v1045 = vpack.c.b16 %v995, %v993
    %v1046 = vpack.c.b16 %v996, %v994
    %v1047 = vpack.c.b16 %v999, %v997
    %v1048 = vpack.c.b16 %v1000, %v998
    %v1049 = vpack.c.b16 %v1003, %v1001
    %v1050 = vpack.c.b16 %v1004, %v1002
    %v1051 = vpack.c.b16 %v1007, %v1005
    %v1052 = vpack.c.b16 %v1008, %v1006
    %v1053 = vpack.c.b16 %v1011, %v1009
    %v1054 = vpack.c.b16 %v1012, %v1010
    %v1055 = vpack.c.b16 %v1015, %v1013
    %v1056 = vpack.c.b16 %v1016, %v1014
    %v1057 = vpack.c.b16 %v1019, %v1017
    %v1058 = vpack.c.b16 %v1020, %v1018
    %v1059 = vpack.c.b16 %v1023, %v1021
    %v1060 = vpack.c.b16 %v1024, %v1022
    %v1061 = vpack.c.b16 %v1027, %v1025
    %v1062 = vpack.c.b16 %v1028, %v1026
    %v1063 = vpack.c.b16 %v1031, %v1029
    %v1064 = vpack.c.b16 %v1032, %v1030
    %1097 = vmatprep.subr.bf16.mxu0 %v1048
    %1098 = vmatpush1.bf16.msra.mxu0 %v1047
    %1099 = vmatprep.subr.bf16.mxu0 %v1046
    %1100 = vmatpush1.bf16.msra.mxu0 %v1045
    %1101 = vmatprep.subr.bf16.mxu0 %v1044
    %1102 = vmatpush1.bf16.msra.mxu0 %v1043
    %1103 = vmatprep.subr.bf16.mxu0 %v1042
    %1104 = vmatpush1.bf16.msra.mxu0 %v1041
    %1105 = vmatprep.subr.bf16.mxu0 %v1040
    %1106 = vmatpush1.bf16.msra.mxu0 %v1039
    %1107 = vmatprep.subr.bf16.mxu0 %v1038
    %1108 = vmatpush1.bf16.msra.mxu0 %v1037
    %1109 = vmatprep.subr.bf16.mxu0 %v1036
    %1110 = vmatpush1.bf16.msra.mxu0 %v1035
    %1111 = vmatprep.subr.bf16.mxu0 %v1034
    %1112 = vmatpush1.bf16.msra.mxu0 %v1033
    %1113 = vmatprep.subr.bf16.mxu0 %v1064
    %1114 = vmatpush2.bf16.msra.mxu0 %v1063
    %1115 = vmatprep.subr.bf16.mxu0 %v1062
    %1116 = vmatpush2.bf16.msra.mxu0 %v1061
    %1117 = vmatprep.subr.bf16.mxu0 %v1060
    %1118 = vmatpush2.bf16.msra.mxu0 %v1059
    %1119 = vmatprep.subr.bf16.mxu0 %v1058
    %1120 = vmatpush2.bf16.msra.mxu0 %v1057
    %1121 = vmatprep.subr.bf16.mxu0 %v1056
    %1122 = vmatpush2.bf16.msra.mxu0 %v1055
    %1123 = vmatprep.subr.bf16.mxu0 %v1054
    %1124 = vmatpush2.bf16.msra.mxu0 %v1053
    %1125 = vmatprep.subr.bf16.mxu0 %v1052
    %1126 = vmatpush2.bf16.msra.mxu0 %v1051
    %1127 = vmatprep.subr.bf16.mxu0 %v1050
    %1128 = vmatpush2.bf16.msra.mxu0 %v1049
    %1129 = vmatprep.mubr.bf16.mxu0 %v934
    %1130 = vmatmul.mubr.bf16.gmra.mxu0 %v933
    %v1131 = vpop.f32.mrf.mxu0
    %v1132 = vadd.f32 %v920, %v1131
    %v1133 = vpop.f32.mrf.mxu0
    %v1134 = vadd.f32 %v924, %v1133
    %v1135 = vpop.f32.mrf.mxu0
    %v1136 = vadd.f32 %v920, %v1135
    %v1137 = vpop.f32.mrf.mxu0
    %v1138 = vadd.f32 %v924, %v1137
    %1139 = vdwg.mxu0
    %1140 = vst [vmem:[#allocation10] sm:$0xff] %v1132
    %1141 = vst [vmem:[#allocation10 + $0x8] sm:$0xff] %v1134
    %1142 = vst [vmem:[#allocation10 + $0x10] sm:$0xff] %v1136
    %1143 = vst [vmem:[#allocation10 + $0x18] sm:$0xff] %v1138
    // Predicated region
    $region26: #{tpu_custom_call.1} parent=1 // pred_check
      _
    $region27: #{tpu_custom_call.1} parent=1 // pred_check_branch
      %1145 = sbr.rel (0) target = $region29
    $region28: #{tpu_custom_call.1} parent=1 // pred_region
      %s1147 = ssub.s32 512, 512
      %1148 = vsyncadd [#allocation6], %s1147
      %s1149 = sshll.u32 [#allocation10], 4
      %s1150 = int_to_ptr.vmem [resolvable:$true] %s1149
      %1155 = dma.vmem_to_hbm [thread:$0]  %s1150, 512, %s3, [#allocation6], 256, 256, 16
    $region29: #{tpu_custom_call.1} parent=1 // pred_fallthru
      _
    // Predicated region
    $region30: #{tpu_custom_call.1} parent=1 // pred_check
      _
    $region31: #{tpu_custom_call.1} parent=1 // pred_check_branch
      %1157 = sbr.rel (0) target = $region33
    $region32: #{tpu_custom_call.1} parent=1 // pred_region
      %1158 = dma.done [#allocation6], 512
    $region33: #{tpu_custom_call.1} parent=1 // pred_fallthru
      _
    %1159 = vsyncpa [#allocation5], 1
    %1160 = vsyncpa [#allocation8], 1
    %1161 = vsyncpa [#allocation6], 1

</llo_original>
